<compile_context>
chip_gen: v7x
topology: tpu7x:2x2x1
jax: 0.10.0
libtpu: 0.0.40
codegen_flags: <defaults>
</compile_context>

<pallas_src>
import jax
import jax.numpy as jnp
from jax import lax
from jax.experimental import pallas as pl
from jax.experimental.pallas import tpu as pltpu


def _round_up(x, m):
    return -(-x // m) * m


def _row_tiling(rows, width, itemsize, target_block_bytes=4 << 20):
    """Row tile (multiple of 8) sized purely by bytes; returns (tile, padded_rows, n_tiles)."""
    bytes_per_row = max(1, width * itemsize)
    max_rows = max(8, (target_block_bytes // bytes_per_row) // 8 * 8)
    if rows <= max_rows:
        tile = _round_up(rows, 8)
        return tile, tile, 1
    n_tiles = -(-rows // max_rows)
    tile = _round_up(-(-rows // n_tiles), 8)
    return tile, tile * n_tiles, n_tiles


def _pc_tiling(batch, n_points, target_block_bytes=2 << 20):
    """Point-cloud N-axis tile (multiple of 128, or the full N for a single block)."""
    col_bytes = 3 * batch * 4
    max_cols = max(128, (target_block_bytes // col_bytes) // 128 * 128)
    if n_points <= max_cols:
        return n_points, n_points, 1
    n_tiles = -(-n_points // max_cols)
    tile = _round_up(-(-n_points // n_tiles), 128)
    return tile, tile * n_tiles, n_tiles


# ---------------------------------------------------------------------------
# Fused kernel: pose losses + tiled point-cloud loss + tiled depth-image MSE
# ---------------------------------------------------------------------------
def _make_fused_kernel(batch, n_points, pc_tile, pc_cols_padded, n_pc_tiles,
                       has_depth, n_mse_tiles, mse_tile_rows, mse_width,
                       inv_mse_count):
    inv_b = 1.0 / float(batch)
    inv_n = 1.0 / float(n_points)
    mask_cols = pc_cols_padded != n_points          # static: padded N columns exist

    def kernel(*refs):
        if has_depth:
            (pose_ref, pc_ref, pred_ref, refl_ref,
             transl_ref, quat_ref, pcloss_ref, mse_ref, mse_acc) = refs
        else:
            (pose_ref, pc_ref, transl_ref, quat_ref, pcloss_ref) = refs

        step = pl.program_id(0)
        last = pl.num_programs(0) - 1

        # ---- step 0: SmoothL1 translation loss + quaternion-distance pieces ----
        @pl.when(step == 0)
        def _pose_losses():
            pose = pose_ref[...]                               # (B, 14)
            te, tt = pose[:, 0:3], pose[:, 3:6]
            q, r = pose[:, 6:10], pose[:, 10:14]

            # SmoothL1(transl_err, target_transl).sum(1).mean()  (beta = 1)
            d = jnp.abs(te - tt)
            sl1 = jnp.where(d < 1.0, 0.5 * d * d, d - 0.5)
            transl_ref[...] = jnp.sum(sl1, keepdims=True) * inv_b

            # t = conj(r) ⊗ q ; angle = 2*atan2(|t_vec|, |t_w|) (atan2 done in wrapper)
            q0, q1, q2, q3 = q[:, 0:1], q[:, 1:2], q[:, 2:3], q[:, 3:4]
            c0, c1, c2, c3 = r[:, 0:1], -r[:, 1:2], -r[:, 2:3], -r[:, 3:4]
            t0 = c0 * q0 - c1 * q1 - c2 * q2 - c3 * q3
            t1 = c0 * q1 + c1 * q0 - c2 * q3 + c3 * q2
            t2 = c0 * q2 + c1 * q3 + c2 * q0 - c3 * q1
            t3 = c0 * q3 - c1 * q2 + c2 * q1 + c3 * q0
            quat_ref[:, 0:1] = jnp.sqrt(t1 * t1 + t2 * t2 + t3 * t3)
            quat_ref[:, 1:2] = jnp.abs(t0)

        # ---- point-cloud loss: tiled over N, accumulated into the resident output ----
        @pl.when(step < n_pc_tiles)
        def _pc_step():
            pose = pose_ref[...]
            te, tt = pose[:, 0:3], pose[:, 3:6]
            q, r = pose[:, 6:10], pose[:, 10:14]

            def rot_rows(quat):                    # 3x3 rotation entries, each (B, 1)
                inv_norm = lax.rsqrt(jnp.sum(quat * quat, axis=1, keepdims=True))
                w = quat[:, 0:1] * inv_norm
                x = quat[:, 1:2] * inv_norm
                y = quat[:, 2:3] * inv_norm
                z = quat[:, 3:4] * inv_norm
                return ((1.0 - 2.0 * (y * y + z * z), 2.0 * (x * y - z * w), 2.0 * (x * z + y * w)),
                        (2.0 * (x * y + z * w), 1.0 - 2.0 * (x * x + z * z), 2.0 * (y * z - x * w)),
                        (2.0 * (x * z - y * w), 2.0 * (y * z + x * w), 1.0 - 2.0 * (x * x + y * y)))

            # Applied rigid transform (rotate_forward applies the INVERSE of its arg):
            #   inv(RT_total) = inv(RT_pred) @ RT_target = [Rp^T Rt | Rp^T (t_t - t_p)]
            rp, rt = rot_rows(q), rot_rows(r)
            dt = (tt[:, 0:1] - te[:, 0:1], tt[:, 1:2] - te[:, 1:2], tt[:, 2:3] - te[:, 2:3])
            a = [[rp[0][j] * rt[0][k] + rp[1][j] * rt[1][k] + rp[2][j] * rt[2][k]
                  for k in range(3)] for j in range(3)]
            tv = [rp[0][j] * dt[0] + rp[1][j] * dt[1] + rp[2][j] * dt[2] for j in range(3)]

            px, py, pz = pc_ref[0], pc_ref[1], pc_ref[2]        # (B, pc_tile)
            # identity subtraction folded into the diagonal coefficients
            dx = (a[0][0] - 1.0) * px + a[0][1] * py + a[0][2] * pz + tv[0]
            dy = a[1][0] * px + (a[1][1] - 1.0) * py + a[1][2] * pz + tv[1]
            dz = a[2][0] * px + a[2][1] * py + (a[2][2] - 1.0) * pz + tv[2]
            err = jnp.sqrt(dx * dx + dy * dy + dz * dz)         # (B, pc_tile)
            # NB: the reference's `error.clamp(100.0)` result is discarded → no-op here.
            if mask_cols:
                col = lax.broadcasted_iota(jnp.int32, err.shape, 1) + step * pc_tile
                err = jnp.where(col < n_points, err, 0.0)
            partial = jnp.sum(err, keepdims=True) * inv_n        # (1,1) partial of Σ_b mean_n

            @pl.when(step == 0)
            def _init_pc():
                pcloss_ref[...] = partial

            @pl.when(step != 0)
            def _acc_pc():
                pcloss_ref[...] += partial

        # ---- depth-image MSE: elementwise VALU accumulation, one XLU reduce at the end ----
        if has_depth:
            @pl.when(step == 0)
            def _init_mse():
                mse_acc[...] = jnp.zeros_like(mse_acc)

            @pl.when(step < n_mse_tiles)
            def _mse_step():
                d = pred_ref[...].astype(jnp.float32) - refl_ref[...].astype(jnp.float32)
                d2 = d * d
                mse_acc[...] += jnp.sum(
                    d2.reshape(mse_tile_rows // 8, 8, mse_width), axis=0)

            @pl.when(step == last)
            def _finalize_mse():
                # divide by the TRUE element count (padding rows contribute 0)
                mse_ref[...] = jnp.sum(mse_acc[...], keepdims=True) * inv_mse_count

    return kernel


# ---------------------------------------------------------------------------
# Single pallas_call wrapper
# ---------------------------------------------------------------------------
def _combined_loss_call(point_clouds, target_transl, target_rot,
                        transl_err, rot_err, predict_depth_image, refl_img):
    f32 = jnp.float32
    B = target_transl.shape[0]

    # one (B, 14) pose slab: [transl_err | target_transl | rot_err | target_rot]
    pose = jnp.concatenate(
        [transl_err.astype(f32), target_transl.astype(f32),
         rot_err.astype(f32), target_rot.astype(f32)], axis=1)

    pc = point_clouds
    if pc.shape[0] == 4:
        # the homogeneous ones-row is never read; drop it (pass (3,B,N) to avoid this copy)
        pc = pc[:3]
    pc = pc.astype(f32)
    _, _, N = pc.shape

    pc_tile, pc_cols_padded, n_pc = _pc_tiling(B, N)
    if pc_cols_padded != N:
        pc = jnp.pad(pc, ((0, 0), (0, 0), (0, pc_cols_padded - N)))   # masked in-kernel

    has_depth = predict_depth_image is not None
    n_mse = 0
    tile_rows = width = 0
    inv_mse_count = 0.0
    mse_args = []
    if has_depth:
        total = predict_depth_image.size
        # fully lane-dense slab when possible (avoids lane padding when W % 128 != 0)
        width = 128 if total % 128 == 0 else predict_depth_image.shape[-1]
        rows = total // width
        itemsize = predict_depth_image.dtype.itemsize
        tile_rows, rows_padded, n_mse = _row_tiling(rows, width, itemsize)
        pred2 = predict_depth_image.reshape(rows, width)   # free contiguous reshape, no cast
        refl2 = refl_img.reshape(rows, width)
        if rows_padded != rows:
            pad = ((0, rows_padded - rows), (0, 0))
            pred2 = jnp.pad(pred2, pad)     # zero rows → zero diff → no MSE contribution
            refl2 = jnp.pad(refl2, pad)
        inv_mse_count = 1.0 / float(total)  # TRUE element count
        mse_args = [pred2, refl2]

    n_steps = max(n_pc, n_mse, 1)

    pc_map = ((lambda i: (0, 0, i)) if n_pc == n_steps
              else (lambda i: (0, 0, jnp.minimum(i, n_pc - 1))))
    in_specs = [pl.BlockSpec((B, 14), lambda i: (0, 0)),
                pl.BlockSpec((3, B, pc_tile), pc_map)]
    args = [pose, pc]
    if has_depth:
        mse_map = ((lambda i: (i, 0)) if n_mse == n_steps
                   else (lambda i: (jnp.minimum(i, n_mse - 1), 0)))
        in_specs += [pl.BlockSpec((tile_rows, width), mse_map),
                     pl.BlockSpec((tile_rows, width), mse_map)]
        args += mse_args

    out_shape = [jax.ShapeDtypeStruct((1, 1), f32),   # SmoothL1 translation loss
                 jax.ShapeDtypeStruct((B, 2), f32),   # [|vec(conj(r)⊗q)|, |w(conj(r)⊗q)|]
                 jax.ShapeDtypeStruct((1, 1), f32)]   # Σ_b mean_n point error
    out_specs = [pl.BlockSpec((1, 1), lambda i: (0, 0)),
                 pl.BlockSpec((B, 2), lambda i: (0, 0)),
                 pl.BlockSpec((1, 1), lambda i: (0, 0))]
    scratch_shapes = []
    if has_depth:
        out_shape.append(jax.ShapeDtypeStruct((1, 1), f32))            # depth MSE
        out_specs.append(pl.BlockSpec((1, 1), lambda i: (0, 0)))
        scratch_shapes.append(pltpu.VMEM((8, width), jnp.float32))     # elementwise MSE acc

    kernel = _make_fused_kernel(
        batch=B, n_points=N, pc_tile=pc_tile, pc_cols_padded=pc_cols_padded,
        n_pc_tiles=n_pc, has_depth=has_depth, n_mse_tiles=n_mse,
        mse_tile_rows=tile_rows, mse_width=width, inv_mse_count=inv_mse_count)

    # VMEM budget: 2 MSE inputs x 2 bufs x ~4 MiB + PC tile x 2 bufs x ~2 MiB + ε ≈ 21 MiB,
    # under the 32 MiB limit requested below (fits v5e/v6e/v7x).
    outs = pl.pallas_call(
        kernel,
        out_shape=tuple(out_shape),
        grid=(n_steps,),
        in_specs=in_specs,
        out_specs=tuple(out_specs),
        scratch_shapes=tuple(scratch_shapes),
        compiler_params=pltpu.CompilerParams(
            dimension_semantics=("arbitrary",),
            vmem_limit_bytes=32 * 1024 * 1024),
    )(*args)
    return outs, has_depth


# ---------------------------------------------------------------------------
# CombinedLoss (forward-pass equivalent of the PyTorch module)
# ---------------------------------------------------------------------------
class CombinedLoss:
    def __init__(self, rescale_trans, rescale_rot, weight_point_cloud):
        self.rescale_trans = rescale_trans
        self.rescale_rot = rescale_rot
        self.weight_point_cloud = weight_point_cloud
        self.loss = {}

    def __call__(self, point_clouds, target_transl, target_rot,
                 transl_err, rot_err, predict_depth_image, refl_img):
        B = target_transl.shape[0]

        outs, has_depth = _combined_loss_call(
            point_clouds, target_transl, target_rot,
            transl_err, rot_err, predict_depth_image, refl_img)
        transl_o, quat_o, pcsum_o = outs[0], outs[1], outs[2]
        depth_loss = outs[3][0, 0] if has_depth else 0.0

        loss_transl = 0.0
        if self.rescale_trans != 0.0:
            loss_transl = transl_o[0, 0]
        loss_rot = 0.0
        if self.rescale_rot != 0.0:
            # quaternion_distance epilogue on B scalars (kept in the wrapper, see TODO).
            loss_rot = jnp.mean(2.0 * jnp.arctan2(quat_o[:, 0], quat_o[:, 1]))

        pose_loss = self.rescale_trans * loss_transl + self.rescale_rot * loss_rot
        point_clouds_loss = pcsum_o[0, 0]

        total_loss = ((1.0 - self.weight_point_cloud) * pose_loss
                      + self.weight_point_cloud * (point_clouds_loss / B)
                      + depth_loss)
        self.loss = {
            "total_loss": total_loss,
            "transl_loss": loss_transl,
            "rot_loss": loss_rot,
            "point_clouds_loss": point_clouds_loss / B,
        }
        return self.loss


if __name__ == "__main__":
    B, N = 8, 256          # batch, points per cloud (fixed N; torch uses a ragged list)
    H, W = 16, 128         # depth image spatial size (NCHW with C=1)

    key = jax.random.PRNGKey(0)
    ks = jax.random.split(key, 8)

    target_transl = 0.1 * jax.random.normal(ks[0], (B, 3), jnp.float32)
    transl_err = target_transl + 0.05 * jax.random.normal(ks[1], (B, 3), jnp.float32)

    def rand_quat(k):
        v = 0.1 * jax.random.normal(k, (B, 4), jnp.float32)
        return v.at[:, 0].add(1.0)

    target_rot = rand_quat(ks[2])
    rot_err = rand_quat(ks[3])

    # Channel-major stacked clouds, xyz only: (3, B, N)
    point_clouds = 10.0 * jax.random.normal(ks[4], (3, B, N), jnp.float32)

    predict_depth_image = jax.random.normal(ks[5], (B, 1, H, W), jnp.float32)
    refl_img = jax.random.normal(ks[6], (B, 1, H, W), jnp.float32)

    loss_fn = CombinedLoss(rescale_trans=1.0, rescale_rot=1.0, weight_point_cloud=0.5)
    losses = loss_fn(point_clouds, target_transl, target_rot,
                     transl_err, rot_err, predict_depth_image, refl_img)
    jax.block_until_ready(losses["total_loss"])
    print("KERNEL_OK")
</pallas_src>

<mosaic_0001>
module attributes {stable_mosaic.version = 11 : i64} {
  func.func @kernel(%arg0: i32, %arg1: memref<8x14xf32, #tpu.memory_space<vmem>>, %arg2: memref<3x8x256xf32, #tpu.memory_space<vmem>>, %arg3: memref<128x128xf32, #tpu.memory_space<vmem>>, %arg4: memref<128x128xf32, #tpu.memory_space<vmem>>, %arg5: memref<1x1xf32, #tpu.memory_space<vmem>>, %arg6: memref<8x2xf32, #tpu.memory_space<vmem>>, %arg7: memref<1x1xf32, #tpu.memory_space<vmem>>, %arg8: memref<1x1xf32, #tpu.memory_space<vmem>>, %arg9: memref<8x128xf32, #tpu.memory_space<vmem>>) attributes {dimension_semantics = [#tpu.dimension_semantics<arbitrary>], iteration_bounds = array<i64: 1>, scalar_prefetch = 0 : i64, scratch_operands = 1 : i64, tpu.core_type = #tpu.core_type<tc>, window_params = [{pipeline_mode = #tpu.pipeline_mode<synchronous>, transform_indices = @transform_0, window_bounds = array<i64: 8, 14>}, {transform_indices = @transform_1, window_bounds = array<i64: 3, 8, 256>}, {transform_indices = @transform_2, window_bounds = array<i64: 128, 128>}, {transform_indices = @transform_3, window_bounds = array<i64: 128, 128>}, {pipeline_mode = #tpu.pipeline_mode<synchronous>, transform_indices = @transform_4, window_bounds = array<i64: 1, 1>}, {pipeline_mode = #tpu.pipeline_mode<synchronous>, transform_indices = @transform_5, window_bounds = array<i64: 8, 2>}, {pipeline_mode = #tpu.pipeline_mode<synchronous>, transform_indices = @transform_6, window_bounds = array<i64: 1, 1>}, {pipeline_mode = #tpu.pipeline_mode<synchronous>, transform_indices = @transform_7, window_bounds = array<i64: 1, 1>}]} {
    %c0_i32 = arith.constant 0 : i32
    %0 = arith.cmpi eq, %arg0, %c0_i32 : i32
    %1 = arith.extui %0 : i1 to i32
    %c0_i32_0 = arith.constant 0 : i32
    %2 = arith.cmpi ne, %1, %c0_i32_0 : i32
    scf.if %2 {
      %c0 = arith.constant 0 : index
      %c0_8 = arith.constant 0 : index
      %15 = vector.load %arg1[%c0, %c0_8] : memref<8x14xf32, #tpu.memory_space<vmem>>, vector<8x14xf32>
      %16 = vector.extract_strided_slice %15 {offsets = [0, 0], sizes = [8, 3], strides = [1, 1]} : vector<8x14xf32> to vector<8x3xf32>
      %17 = vector.extract_strided_slice %15 {offsets = [0, 3], sizes = [8, 3], strides = [1, 1]} : vector<8x14xf32> to vector<8x3xf32>
      %18 = vector.extract_strided_slice %15 {offsets = [0, 6], sizes = [8, 4], strides = [1, 1]} : vector<8x14xf32> to vector<8x4xf32>
      %19 = vector.extract_strided_slice %15 {offsets = [0, 10], sizes = [8, 4], strides = [1, 1]} : vector<8x14xf32> to vector<8x4xf32>
      %20 = arith.subf %16, %17 : vector<8x3xf32>
      %21 = math.absf %20 : vector<8x3xf32>
      %cst = arith.constant 1.000000e+00 : f32
      %22 = vector.broadcast %cst : f32 to vector<8x3xf32>
      %23 = arith.cmpf olt, %21, %22 : vector<8x3xf32>
      %cst_9 = arith.constant 5.000000e-01 : f32
      %24 = vector.broadcast %cst_9 : f32 to vector<8x3xf32>
      %25 = arith.mulf %24, %21 : vector<8x3xf32>
      %26 = arith.mulf %25, %21 : vector<8x3xf32>
      %cst_10 = arith.constant 5.000000e-01 : f32
      %27 = vector.broadcast %cst_10 : f32 to vector<8x3xf32>
      %28 = arith.subf %21, %27 : vector<8x3xf32>
      %29 = arith.select %23, %26, %28 : vector<8x3xi1>, vector<8x3xf32>
      %30 = vector.shape_cast %29 : vector<8x3xf32> to vector<1x8x3xf32>
      %cst_11 = arith.constant dense<0.000000e+00> : vector<1xf32>
      %31 = vector.multi_reduction <add>, %30, %cst_11 [1, 2] : vector<1x8x3xf32> to vector<1xf32>
      %32 = vector.shape_cast %31 : vector<1xf32> to vector<1x1x1xf32>
      %33 = vector.extract %32[0, 0, 0] : f32 from vector<1x1x1xf32>
      %34 = vector.broadcast %33 : f32 to vector<1x1xf32>
      %cst_12 = arith.constant 1.250000e-01 : f32
      %35 = vector.broadcast %cst_12 : f32 to vector<1x1xf32>
      %36 = arith.mulf %34, %35 : vector<1x1xf32>
      %c0_13 = arith.constant 0 : index
      %c0_14 = arith.constant 0 : index
      %37 = vector.load %arg5[%c0_13, %c0_14] : memref<1x1xf32, #tpu.memory_space<vmem>>, vector<1x1xf32>
      tpu.vector_store %arg5[%c0_13, %c0_14], %36 {strides = array<i32>} : memref<1x1xf32, #tpu.memory_space<vmem>>, vector<1x1xf32>,
      %38 = vector.extract_strided_slice %18 {offsets = [0, 0], sizes = [8, 1], strides = [1, 1]} : vector<8x4xf32> to vector<8x1xf32>
      %39 = vector.extract_strided_slice %18 {offsets = [0, 1], sizes = [8, 1], strides = [1, 1]} : vector<8x4xf32> to vector<8x1xf32>
      %40 = vector.extract_strided_slice %18 {offsets = [0, 2], sizes = [8, 1], strides = [1, 1]} : vector<8x4xf32> to vector<8x1xf32>
      %41 = vector.extract_strided_slice %18 {offsets = [0, 3], sizes = [8, 1], strides = [1, 1]} : vector<8x4xf32> to vector<8x1xf32>
      %42 = vector.extract_strided_slice %19 {offsets = [0, 0], sizes = [8, 1], strides = [1, 1]} : vector<8x4xf32> to vector<8x1xf32>
      %43 = vector.extract_strided_slice %19 {offsets = [0, 1], sizes = [8, 1], strides = [1, 1]} : vector<8x4xf32> to vector<8x1xf32>
      %cst_15 = arith.constant 0.000000e+00 : f32
      %44 = vector.broadcast %cst_15 : f32 to vector<8x1xf32>
      %45 = arith.subf %44, %43 : vector<8x1xf32>
      %46 = vector.extract_strided_slice %19 {offsets = [0, 2], sizes = [8, 1], strides = [1, 1]} : vector<8x4xf32> to vector<8x1xf32>
      %cst_16 = arith.constant 0.000000e+00 : f32
      %47 = vector.broadcast %cst_16 : f32 to vector<8x1xf32>
      %48 = arith.subf %47, %46 : vector<8x1xf32>
      %49 = vector.extract_strided_slice %19 {offsets = [0, 3], sizes = [8, 1], strides = [1, 1]} : vector<8x4xf32> to vector<8x1xf32>
      %cst_17 = arith.constant 0.000000e+00 : f32
      %50 = vector.broadcast %cst_17 : f32 to vector<8x1xf32>
      %51 = arith.subf %50, %49 : vector<8x1xf32>
      %52 = arith.mulf %42, %38 : vector<8x1xf32>
      %53 = arith.mulf %45, %39 : vector<8x1xf32>
      %54 = arith.subf %52, %53 : vector<8x1xf32>
      %55 = arith.mulf %48, %40 : vector<8x1xf32>
      %56 = arith.subf %54, %55 : vector<8x1xf32>
      %57 = arith.mulf %51, %41 : vector<8x1xf32>
      %58 = arith.subf %56, %57 : vector<8x1xf32>
      %59 = arith.mulf %42, %39 : vector<8x1xf32>
      %60 = arith.mulf %45, %38 : vector<8x1xf32>
      %61 = arith.addf %59, %60 : vector<8x1xf32>
      %62 = arith.mulf %48, %41 : vector<8x1xf32>
      %63 = arith.subf %61, %62 : vector<8x1xf32>
      %64 = arith.mulf %51, %40 : vector<8x1xf32>
      %65 = arith.addf %63, %64 : vector<8x1xf32>
      %66 = arith.mulf %42, %40 : vector<8x1xf32>
      %67 = arith.mulf %45, %41 : vector<8x1xf32>
      %68 = arith.addf %66, %67 : vector<8x1xf32>
      %69 = arith.mulf %48, %38 : vector<8x1xf32>
      %70 = arith.addf %68, %69 : vector<8x1xf32>
      %71 = arith.mulf %51, %39 : vector<8x1xf32>
      %72 = arith.subf %70, %71 : vector<8x1xf32>
      %73 = arith.mulf %42, %41 : vector<8x1xf32>
      %74 = arith.mulf %45, %40 : vector<8x1xf32>
      %75 = arith.subf %73, %74 : vector<8x1xf32>
      %76 = arith.mulf %48, %39 : vector<8x1xf32>
      %77 = arith.addf %75, %76 : vector<8x1xf32>
      %78 = arith.mulf %51, %38 : vector<8x1xf32>
      %79 = arith.addf %77, %78 : vector<8x1xf32>
      %80 = arith.mulf %65, %65 : vector<8x1xf32>
      %81 = arith.mulf %72, %72 : vector<8x1xf32>
      %82 = arith.addf %80, %81 : vector<8x1xf32>
      %83 = arith.mulf %79, %79 : vector<8x1xf32>
      %84 = arith.addf %82, %83 : vector<8x1xf32>
      %85 = math.sqrt %84 : vector<8x1xf32>
      %c0_18 = arith.constant 0 : index
      %c0_19 = arith.constant 0 : index
      %86 = vector.load %arg6[%c0_18, %c0_19] : memref<8x2xf32, #tpu.memory_space<vmem>>, vector<8x1xf32>
      tpu.vector_store %arg6[%c0_18, %c0_19], %85 {strides = array<i32>} : memref<8x2xf32, #tpu.memory_space<vmem>>, vector<8x1xf32>,
      %87 = math.absf %58 : vector<8x1xf32>
      %c0_20 = arith.constant 0 : index
      %c1 = arith.constant 1 : index
      %88 = vector.load %arg6[%c0_20, %c1] : memref<8x2xf32, #tpu.memory_space<vmem>>, vector<8x1xf32>
      tpu.vector_store %arg6[%c0_20, %c1], %87 {strides = array<i32>} : memref<8x2xf32, #tpu.memory_space<vmem>>, vector<8x1xf32>,
    } else {
    }
    %c1_i32 = arith.constant 1 : i32
    %3 = arith.cmpi slt, %arg0, %c1_i32 : i32
    %4 = arith.extui %3 : i1 to i32
    %c0_i32_1 = arith.constant 0 : i32
    %5 = arith.cmpi ne, %4, %c0_i32_1 : i32
    scf.if %5 {
      %c0 = arith.constant 0 : index
      %c0_8 = arith.constant 0 : index
      %15 = vector.load %arg1[%c0, %c0_8] : memref<8x14xf32, #tpu.memory_space<vmem>>, vector<8x14xf32>
      %16 = vector.extract_strided_slice %15 {offsets = [0, 0], sizes = [8, 3], strides = [1, 1]} : vector<8x14xf32> to vector<8x3xf32>
      %17 = vector.extract_strided_slice %15 {offsets = [0, 3], sizes = [8, 3], strides = [1, 1]} : vector<8x14xf32> to vector<8x3xf32>
      %18 = vector.extract_strided_slice %15 {offsets = [0, 6], sizes = [8, 4], strides = [1, 1]} : vector<8x14xf32> to vector<8x4xf32>
      %19 = vector.extract_strided_slice %15 {offsets = [0, 10], sizes = [8, 4], strides = [1, 1]} : vector<8x14xf32> to vector<8x4xf32>
      %20 = arith.mulf %18, %18 : vector<8x4xf32>
      %cst = arith.constant dense<0.000000e+00> : vector<8xf32>
      %21 = vector.multi_reduction <add>, %20, %cst [1] : vector<8x4xf32> to vector<8xf32>
      %22 = vector.shape_cast %21 : vector<8xf32> to vector<8x1xf32>
      %23 = math.rsqrt %22 : vector<8x1xf32>
      %24 = vector.extract_strided_slice %18 {offsets = [0, 0], sizes = [8, 1], strides = [1, 1]} : vector<8x4xf32> to vector<8x1xf32>
      %25 = arith.mulf %24, %23 : vector<8x1xf32>
      %26 = vector.extract_strided_slice %18 {offsets = [0, 1], sizes = [8, 1], strides = [1, 1]} : vector<8x4xf32> to vector<8x1xf32>
      %27 = arith.mulf %26, %23 : vector<8x1xf32>
      %28 = vector.extract_strided_slice %18 {offsets = [0, 2], sizes = [8, 1], strides = [1, 1]} : vector<8x4xf32> to vector<8x1xf32>
      %29 = arith.mulf %28, %23 : vector<8x1xf32>
      %30 = vector.extract_strided_slice %18 {offsets = [0, 3], sizes = [8, 1], strides = [1, 1]} : vector<8x4xf32> to vector<8x1xf32>
      %31 = arith.mulf %30, %23 : vector<8x1xf32>
      %32 = arith.mulf %29, %29 : vector<8x1xf32>
      %33 = arith.mulf %31, %31 : vector<8x1xf32>
      %34 = arith.addf %32, %33 : vector<8x1xf32>
      %cst_9 = arith.constant 2.000000e+00 : f32
      %35 = vector.broadcast %cst_9 : f32 to vector<8x1xf32>
      %36 = arith.mulf %35, %34 : vector<8x1xf32>
      %cst_10 = arith.constant 1.000000e+00 : f32
      %37 = vector.broadcast %cst_10 : f32 to vector<8x1xf32>
      %38 = arith.subf %37, %36 : vector<8x1xf32>
      %39 = arith.mulf %27, %29 : vector<8x1xf32>
      %40 = arith.mulf %31, %25 : vector<8x1xf32>
      %41 = arith.subf %39, %40 : vector<8x1xf32>
      %cst_11 = arith.constant 2.000000e+00 : f32
      %42 = vector.broadcast %cst_11 : f32 to vector<8x1xf32>
      %43 = arith.mulf %42, %41 : vector<8x1xf32>
      %44 = arith.mulf %27, %31 : vector<8x1xf32>
      %45 = arith.mulf %29, %25 : vector<8x1xf32>
      %46 = arith.addf %44, %45 : vector<8x1xf32>
      %cst_12 = arith.constant 2.000000e+00 : f32
      %47 = vector.broadcast %cst_12 : f32 to vector<8x1xf32>
      %48 = arith.mulf %47, %46 : vector<8x1xf32>
      %49 = arith.mulf %27, %29 : vector<8x1xf32>
      %50 = arith.mulf %31, %25 : vector<8x1xf32>
      %51 = arith.addf %49, %50 : vector<8x1xf32>
      %cst_13 = arith.constant 2.000000e+00 : f32
      %52 = vector.broadcast %cst_13 : f32 to vector<8x1xf32>
      %53 = arith.mulf %52, %51 : vector<8x1xf32>
      %54 = arith.mulf %27, %27 : vector<8x1xf32>
      %55 = arith.mulf %31, %31 : vector<8x1xf32>
      %56 = arith.addf %54, %55 : vector<8x1xf32>
      %cst_14 = arith.constant 2.000000e+00 : f32
      %57 = vector.broadcast %cst_14 : f32 to vector<8x1xf32>
      %58 = arith.mulf %57, %56 : vector<8x1xf32>
      %cst_15 = arith.constant 1.000000e+00 : f32
      %59 = vector.broadcast %cst_15 : f32 to vector<8x1xf32>
      %60 = arith.subf %59, %58 : vector<8x1xf32>
      %61 = arith.mulf %29, %31 : vector<8x1xf32>
      %62 = arith.mulf %27, %25 : vector<8x1xf32>
      %63 = arith.subf %61, %62 : vector<8x1xf32>
      %cst_16 = arith.constant 2.000000e+00 : f32
      %64 = vector.broadcast %cst_16 : f32 to vector<8x1xf32>
      %65 = arith.mulf %64, %63 : vector<8x1xf32>
      %66 = arith.mulf %27, %31 : vector<8x1xf32>
      %67 = arith.mulf %29, %25 : vector<8x1xf32>
      %68 = arith.subf %66, %67 : vector<8x1xf32>
      %cst_17 = arith.constant 2.000000e+00 : f32
      %69 = vector.broadcast %cst_17 : f32 to vector<8x1xf32>
      %70 = arith.mulf %69, %68 : vector<8x1xf32>
      %71 = arith.mulf %29, %31 : vector<8x1xf32>
      %72 = arith.mulf %27, %25 : vector<8x1xf32>
      %73 = arith.addf %71, %72 : vector<8x1xf32>
      %cst_18 = arith.constant 2.000000e+00 : f32
      %74 = vector.broadcast %cst_18 : f32 to vector<8x1xf32>
      %75 = arith.mulf %74, %73 : vector<8x1xf32>
      %76 = arith.mulf %27, %27 : vector<8x1xf32>
      %77 = arith.mulf %29, %29 : vector<8x1xf32>
      %78 = arith.addf %76, %77 : vector<8x1xf32>
      %cst_19 = arith.constant 2.000000e+00 : f32
      %79 = vector.broadcast %cst_19 : f32 to vector<8x1xf32>
      %80 = arith.mulf %79, %78 : vector<8x1xf32>
      %cst_20 = arith.constant 1.000000e+00 : f32
      %81 = vector.broadcast %cst_20 : f32 to vector<8x1xf32>
      %82 = arith.subf %81, %80 : vector<8x1xf32>
      %83 = arith.mulf %19, %19 : vector<8x4xf32>
      %cst_21 = arith.constant dense<0.000000e+00> : vector<8xf32>
      %84 = vector.multi_reduction <add>, %83, %cst_21 [1] : vector<8x4xf32> to vector<8xf32>
      %85 = vector.shape_cast %84 : vector<8xf32> to vector<8x1xf32>
      %86 = math.rsqrt %85 : vector<8x1xf32>
      %87 = vector.extract_strided_slice %19 {offsets = [0, 0], sizes = [8, 1], strides = [1, 1]} : vector<8x4xf32> to vector<8x1xf32>
      %88 = arith.mulf %87, %86 : vector<8x1xf32>
      %89 = vector.extract_strided_slice %19 {offsets = [0, 1], sizes = [8, 1], strides = [1, 1]} : vector<8x4xf32> to vector<8x1xf32>
      %90 = arith.mulf %89, %86 : vector<8x1xf32>
      %91 = vector.extract_strided_slice %19 {offsets = [0, 2], sizes = [8, 1], strides = [1, 1]} : vector<8x4xf32> to vector<8x1xf32>
      %92 = arith.mulf %91, %86 : vector<8x1xf32>
      %93 = vector.extract_strided_slice %19 {offsets = [0, 3], sizes = [8, 1], strides = [1, 1]} : vector<8x4xf32> to vector<8x1xf32>
      %94 = arith.mulf %93, %86 : vector<8x1xf32>
      %95 = arith.mulf %92, %92 : vector<8x1xf32>
      %96 = arith.mulf %94, %94 : vector<8x1xf32>
      %97 = arith.addf %95, %96 : vector<8x1xf32>
      %cst_22 = arith.constant 2.000000e+00 : f32
      %98 = vector.broadcast %cst_22 : f32 to vector<8x1xf32>
      %99 = arith.mulf %98, %97 : vector<8x1xf32>
      %cst_23 = arith.constant 1.000000e+00 : f32
      %100 = vector.broadcast %cst_23 : f32 to vector<8x1xf32>
      %101 = arith.subf %100, %99 : vector<8x1xf32>
      %102 = arith.mulf %90, %92 : vector<8x1xf32>
      %103 = arith.mulf %94, %88 : vector<8x1xf32>
      %104 = arith.subf %102, %103 : vector<8x1xf32>
      %cst_24 = arith.constant 2.000000e+00 : f32
      %105 = vector.broadcast %cst_24 : f32 to vector<8x1xf32>
      %106 = arith.mulf %105, %104 : vector<8x1xf32>
      %107 = arith.mulf %90, %94 : vector<8x1xf32>
      %108 = arith.mulf %92, %88 : vector<8x1xf32>
      %109 = arith.addf %107, %108 : vector<8x1xf32>
      %cst_25 = arith.constant 2.000000e+00 : f32
      %110 = vector.broadcast %cst_25 : f32 to vector<8x1xf32>
      %111 = arith.mulf %110, %109 : vector<8x1xf32>
      %112 = arith.mulf %90, %92 : vector<8x1xf32>
      %113 = arith.mulf %94, %88 : vector<8x1xf32>
      %114 = arith.addf %112, %113 : vector<8x1xf32>
      %cst_26 = arith.constant 2.000000e+00 : f32
      %115 = vector.broadcast %cst_26 : f32 to vector<8x1xf32>
      %116 = arith.mulf %115, %114 : vector<8x1xf32>
      %117 = arith.mulf %90, %90 : vector<8x1xf32>
      %118 = arith.mulf %94, %94 : vector<8x1xf32>
      %119 = arith.addf %117, %118 : vector<8x1xf32>
      %cst_27 = arith.constant 2.000000e+00 : f32
      %120 = vector.broadcast %cst_27 : f32 to vector<8x1xf32>
      %121 = arith.mulf %120, %119 : vector<8x1xf32>
      %cst_28 = arith.constant 1.000000e+00 : f32
      %122 = vector.broadcast %cst_28 : f32 to vector<8x1xf32>
      %123 = arith.subf %122, %121 : vector<8x1xf32>
      %124 = arith.mulf %92, %94 : vector<8x1xf32>
      %125 = arith.mulf %90, %88 : vector<8x1xf32>
      %126 = arith.subf %124, %125 : vector<8x1xf32>
      %cst_29 = arith.constant 2.000000e+00 : f32
      %127 = vector.broadcast %cst_29 : f32 to vector<8x1xf32>
      %128 = arith.mulf %127, %126 : vector<8x1xf32>
      %129 = arith.mulf %90, %94 : vector<8x1xf32>
      %130 = arith.mulf %92, %88 : vector<8x1xf32>
      %131 = arith.subf %129, %130 : vector<8x1xf32>
      %cst_30 = arith.constant 2.000000e+00 : f32
      %132 = vector.broadcast %cst_30 : f32 to vector<8x1xf32>
      %133 = arith.mulf %132, %131 : vector<8x1xf32>
      %134 = arith.mulf %92, %94 : vector<8x1xf32>
      %135 = arith.mulf %90, %88 : vector<8x1xf32>
      %136 = arith.addf %134, %135 : vector<8x1xf32>
      %cst_31 = arith.constant 2.000000e+00 : f32
      %137 = vector.broadcast %cst_31 : f32 to vector<8x1xf32>
      %138 = arith.mulf %137, %136 : vector<8x1xf32>
      %139 = arith.mulf %90, %90 : vector<8x1xf32>
      %140 = arith.mulf %92, %92 : vector<8x1xf32>
      %141 = arith.addf %139, %140 : vector<8x1xf32>
      %cst_32 = arith.constant 2.000000e+00 : f32
      %142 = vector.broadcast %cst_32 : f32 to vector<8x1xf32>
      %143 = arith.mulf %142, %141 : vector<8x1xf32>
      %cst_33 = arith.constant 1.000000e+00 : f32
      %144 = vector.broadcast %cst_33 : f32 to vector<8x1xf32>
      %145 = arith.subf %144, %143 : vector<8x1xf32>
      %146 = vector.extract_strided_slice %17 {offsets = [0, 0], sizes = [8, 1], strides = [1, 1]} : vector<8x3xf32> to vector<8x1xf32>
      %147 = vector.extract_strided_slice %16 {offsets = [0, 0], sizes = [8, 1], strides = [1, 1]} : vector<8x3xf32> to vector<8x1xf32>
      %148 = arith.subf %146, %147 : vector<8x1xf32>
      %149 = vector.extract_strided_slice %17 {offsets = [0, 1], sizes = [8, 1], strides = [1, 1]} : vector<8x3xf32> to vector<8x1xf32>
      %150 = vector.extract_strided_slice %16 {offsets = [0, 1], sizes = [8, 1], strides = [1, 1]} : vector<8x3xf32> to vector<8x1xf32>
      %151 = arith.subf %149, %150 : vector<8x1xf32>
      %152 = vector.extract_strided_slice %17 {offsets = [0, 2], sizes = [8, 1], strides = [1, 1]} : vector<8x3xf32> to vector<8x1xf32>
      %153 = vector.extract_strided_slice %16 {offsets = [0, 2], sizes = [8, 1], strides = [1, 1]} : vector<8x3xf32> to vector<8x1xf32>
      %154 = arith.subf %152, %153 : vector<8x1xf32>
      %155 = arith.mulf %38, %101 : vector<8x1xf32>
      %156 = arith.mulf %53, %116 : vector<8x1xf32>
      %157 = arith.addf %155, %156 : vector<8x1xf32>
      %158 = arith.mulf %70, %133 : vector<8x1xf32>
      %159 = arith.addf %157, %158 : vector<8x1xf32>
      %160 = arith.mulf %38, %106 : vector<8x1xf32>
      %161 = arith.mulf %53, %123 : vector<8x1xf32>
      %162 = arith.addf %160, %161 : vector<8x1xf32>
      %163 = arith.mulf %70, %138 : vector<8x1xf32>
      %164 = arith.addf %162, %163 : vector<8x1xf32>
      %165 = arith.mulf %38, %111 : vector<8x1xf32>
      %166 = arith.mulf %53, %128 : vector<8x1xf32>
      %167 = arith.addf %165, %166 : vector<8x1xf32>
      %168 = arith.mulf %70, %145 : vector<8x1xf32>
      %169 = arith.addf %167, %168 : vector<8x1xf32>
      %170 = arith.mulf %43, %101 : vector<8x1xf32>
      %171 = arith.mulf %60, %116 : vector<8x1xf32>
      %172 = arith.addf %170, %171 : vector<8x1xf32>
      %173 = arith.mulf %75, %133 : vector<8x1xf32>
      %174 = arith.addf %172, %173 : vector<8x1xf32>
      %175 = arith.mulf %43, %106 : vector<8x1xf32>
      %176 = arith.mulf %60, %123 : vector<8x1xf32>
      %177 = arith.addf %175, %176 : vector<8x1xf32>
      %178 = arith.mulf %75, %138 : vector<8x1xf32>
      %179 = arith.addf %177, %178 : vector<8x1xf32>
      %180 = arith.mulf %43, %111 : vector<8x1xf32>
      %181 = arith.mulf %60, %128 : vector<8x1xf32>
      %182 = arith.addf %180, %181 : vector<8x1xf32>
      %183 = arith.mulf %75, %145 : vector<8x1xf32>
      %184 = arith.addf %182, %183 : vector<8x1xf32>
      %185 = arith.mulf %48, %101 : vector<8x1xf32>
      %186 = arith.mulf %65, %116 : vector<8x1xf32>
      %187 = arith.addf %185, %186 : vector<8x1xf32>
      %188 = arith.mulf %82, %133 : vector<8x1xf32>
      %189 = arith.addf %187, %188 : vector<8x1xf32>
      %190 = arith.mulf %48, %106 : vector<8x1xf32>
      %191 = arith.mulf %65, %123 : vector<8x1xf32>
      %192 = arith.addf %190, %191 : vector<8x1xf32>
      %193 = arith.mulf %82, %138 : vector<8x1xf32>
      %194 = arith.addf %192, %193 : vector<8x1xf32>
      %195 = arith.mulf %48, %111 : vector<8x1xf32>
      %196 = arith.mulf %65, %128 : vector<8x1xf32>
      %197 = arith.addf %195, %196 : vector<8x1xf32>
      %198 = arith.mulf %82, %145 : vector<8x1xf32>
      %199 = arith.addf %197, %198 : vector<8x1xf32>
      %200 = arith.mulf %38, %148 : vector<8x1xf32>
      %201 = arith.mulf %53, %151 : vector<8x1xf32>
      %202 = arith.addf %200, %201 : vector<8x1xf32>
      %203 = arith.mulf %70, %154 : vector<8x1xf32>
      %204 = arith.addf %202, %203 : vector<8x1xf32>
      %205 = arith.mulf %43, %148 : vector<8x1xf32>
      %206 = arith.mulf %60, %151 : vector<8x1xf32>
      %207 = arith.addf %205, %206 : vector<8x1xf32>
      %208 = arith.mulf %75, %154 : vector<8x1xf32>
      %209 = arith.addf %207, %208 : vector<8x1xf32>
      %210 = arith.mulf %48, %148 : vector<8x1xf32>
      %211 = arith.mulf %65, %151 : vector<8x1xf32>
      %212 = arith.addf %210, %211 : vector<8x1xf32>
      %213 = arith.mulf %82, %154 : vector<8x1xf32>
      %214 = arith.addf %212, %213 : vector<8x1xf32>
      %c0_34 = arith.constant 0 : index
      %c0_35 = arith.constant 0 : index
      %c0_36 = arith.constant 0 : index
      %215 = vector.load %arg2[%c0_34, %c0_35, %c0_36] : memref<3x8x256xf32, #tpu.memory_space<vmem>>, vector<1x8x256xf32>
      %216 = vector.shape_cast %215 : vector<1x8x256xf32> to vector<8x256xf32>
      %c1 = arith.constant 1 : index
      %c0_37 = arith.constant 0 : index
      %c0_38 = arith.constant 0 : index
      %217 = vector.load %arg2[%c1, %c0_37, %c0_38] : memref<3x8x256xf32, #tpu.memory_space<vmem>>, vector<1x8x256xf32>
      %218 = vector.shape_cast %217 : vector<1x8x256xf32> to vector<8x256xf32>
      %c2 = arith.constant 2 : index
      %c0_39 = arith.constant 0 : index
      %c0_40 = arith.constant 0 : index
      %219 = vector.load %arg2[%c2, %c0_39, %c0_40] : memref<3x8x256xf32, #tpu.memory_space<vmem>>, vector<1x8x256xf32>
      %220 = vector.shape_cast %219 : vector<1x8x256xf32> to vector<8x256xf32>
      %cst_41 = arith.constant 1.000000e+00 : f32
      %221 = vector.broadcast %cst_41 : f32 to vector<8x1xf32>
      %222 = arith.subf %159, %221 : vector<8x1xf32>
      %223 = vector.broadcast %222 : vector<8x1xf32> to vector<8x256xf32>
      %224 = arith.mulf %223, %216 : vector<8x256xf32>
      %225 = vector.broadcast %164 : vector<8x1xf32> to vector<8x256xf32>
      %226 = arith.mulf %225, %218 : vector<8x256xf32>
      %227 = arith.addf %224, %226 : vector<8x256xf32>
      %228 = vector.broadcast %169 : vector<8x1xf32> to vector<8x256xf32>
      %229 = arith.mulf %228, %220 : vector<8x256xf32>
      %230 = arith.addf %227, %229 : vector<8x256xf32>
      %231 = vector.broadcast %204 : vector<8x1xf32> to vector<8x256xf32>
      %232 = arith.addf %230, %231 : vector<8x256xf32>
      %233 = vector.broadcast %174 : vector<8x1xf32> to vector<8x256xf32>
      %234 = arith.mulf %233, %216 : vector<8x256xf32>
      %cst_42 = arith.constant 1.000000e+00 : f32
      %235 = vector.broadcast %cst_42 : f32 to vector<8x1xf32>
      %236 = arith.subf %179, %235 : vector<8x1xf32>
      %237 = vector.broadcast %236 : vector<8x1xf32> to vector<8x256xf32>
      %238 = arith.mulf %237, %218 : vector<8x256xf32>
      %239 = arith.addf %234, %238 : vector<8x256xf32>
      %240 = vector.broadcast %184 : vector<8x1xf32> to vector<8x256xf32>
      %241 = arith.mulf %240, %220 : vector<8x256xf32>
      %242 = arith.addf %239, %241 : vector<8x256xf32>
      %243 = vector.broadcast %209 : vector<8x1xf32> to vector<8x256xf32>
      %244 = arith.addf %242, %243 : vector<8x256xf32>
      %245 = vector.broadcast %189 : vector<8x1xf32> to vector<8x256xf32>
      %246 = arith.mulf %245, %216 : vector<8x256xf32>
      %247 = vector.broadcast %194 : vector<8x1xf32> to vector<8x256xf32>
      %248 = arith.mulf %247, %218 : vector<8x256xf32>
      %249 = arith.addf %246, %248 : vector<8x256xf32>
      %cst_43 = arith.constant 1.000000e+00 : f32
      %250 = vector.broadcast %cst_43 : f32 to vector<8x1xf32>
      %251 = arith.subf %199, %250 : vector<8x1xf32>
      %252 = vector.broadcast %251 : vector<8x1xf32> to vector<8x256xf32>
      %253 = arith.mulf %252, %220 : vector<8x256xf32>
      %254 = arith.addf %249, %253 : vector<8x256xf32>
      %255 = vector.broadcast %214 : vector<8x1xf32> to vector<8x256xf32>
      %256 = arith.addf %254, %255 : vector<8x256xf32>
      %257 = arith.mulf %232, %232 : vector<8x256xf32>
      %258 = arith.mulf %244, %244 : vector<8x256xf32>
      %259 = arith.addf %257, %258 : vector<8x256xf32>
      %260 = arith.mulf %256, %256 : vector<8x256xf32>
      %261 = arith.addf %259, %260 : vector<8x256xf32>
      %262 = math.sqrt %261 : vector<8x256xf32>
      %263 = vector.shape_cast %262 : vector<8x256xf32> to vector<1x8x256xf32>
      %cst_44 = arith.constant dense<0.000000e+00> : vector<1xf32>
      %264 = vector.multi_reduction <add>, %263, %cst_44 [1, 2] : vector<1x8x256xf32> to vector<1xf32>
      %265 = vector.shape_cast %264 : vector<1xf32> to vector<1x1x1xf32>
      %266 = vector.extract %265[0, 0, 0] : f32 from vector<1x1x1xf32>
      %267 = vector.broadcast %266 : f32 to vector<1x1xf32>
      %cst_45 = arith.constant 3.906250e-03 : f32
      %268 = vector.broadcast %cst_45 : f32 to vector<1x1xf32>
      %269 = arith.mulf %267, %268 : vector<1x1xf32>
      %c0_i32_46 = arith.constant 0 : i32
      %270 = arith.cmpi eq, %arg0, %c0_i32_46 : i32
      %271 = arith.extui %270 : i1 to i32
      %c0_i32_47 = arith.constant 0 : i32
      %272 = arith.cmpi ne, %271, %c0_i32_47 : i32
      scf.if %272 {
        %c0_50 = arith.constant 0 : index
        %c0_51 = arith.constant 0 : index
        %276 = vector.load %arg7[%c0_50, %c0_51] : memref<1x1xf32, #tpu.memory_space<vmem>>, vector<1x1xf32>
        tpu.vector_store %arg7[%c0_50, %c0_51], %269 {strides = array<i32>} : memref<1x1xf32, #tpu.memory_space<vmem>>, vector<1x1xf32>,
      } else {
      }
      %c0_i32_48 = arith.constant 0 : i32
      %273 = arith.cmpi ne, %arg0, %c0_i32_48 : i32
      %274 = arith.extui %273 : i1 to i32
      %c0_i32_49 = arith.constant 0 : i32
      %275 = arith.cmpi ne, %274, %c0_i32_49 : i32
      scf.if %275 {
        %c0_50 = arith.constant 0 : index
        %c0_51 = arith.constant 0 : index
        %276 = vector.load %arg7[%c0_50, %c0_51] : memref<1x1xf32, #tpu.memory_space<vmem>>, vector<1x1xf32>
        %277 = arith.addf %276, %269 : vector<1x1xf32>
        %c0_52 = arith.constant 0 : index
        %c0_53 = arith.constant 0 : index
        %278 = vector.load %arg7[%c0_52, %c0_53] : memref<1x1xf32, #tpu.memory_space<vmem>>, vector<1x1xf32>
        tpu.vector_store %arg7[%c0_52, %c0_53], %277 {strides = array<i32>} : memref<1x1xf32, #tpu.memory_space<vmem>>, vector<1x1xf32>,
      } else {
      }
    } else {
    }
    %c0_i32_2 = arith.constant 0 : i32
    %6 = arith.cmpi eq, %arg0, %c0_i32_2 : i32
    %7 = arith.extui %6 : i1 to i32
    %c0_i32_3 = arith.constant 0 : i32
    %8 = arith.cmpi ne, %7, %c0_i32_3 : i32
    scf.if %8 {
      %cst = arith.constant 0.000000e+00 : f32
      %15 = vector.broadcast %cst : f32 to vector<8x128xf32>
      %c0 = arith.constant 0 : index
      %c0_8 = arith.constant 0 : index
      %16 = vector.load %arg9[%c0, %c0_8] : memref<8x128xf32, #tpu.memory_space<vmem>>, vector<8x128xf32>
      tpu.vector_store %arg9[%c0, %c0_8], %15 {strides = array<i32>} : memref<8x128xf32, #tpu.memory_space<vmem>>, vector<8x128xf32>,
    } else {
    }
    %c1_i32_4 = arith.constant 1 : i32
    %9 = arith.cmpi slt, %arg0, %c1_i32_4 : i32
    %10 = arith.extui %9 : i1 to i32
    %c0_i32_5 = arith.constant 0 : i32
    %11 = arith.cmpi ne, %10, %c0_i32_5 : i32
    scf.if %11 {
      %c0 = arith.constant 0 : index
      %c0_8 = arith.constant 0 : index
      %15 = vector.load %arg3[%c0, %c0_8] : memref<128x128xf32, #tpu.memory_space<vmem>>, vector<128x128xf32>
      %c0_9 = arith.constant 0 : index
      %c0_10 = arith.constant 0 : index
      %16 = vector.load %arg4[%c0_9, %c0_10] : memref<128x128xf32, #tpu.memory_space<vmem>>, vector<128x128xf32>
      %17 = arith.subf %15, %16 : vector<128x128xf32>
      %18 = arith.mulf %17, %17 : vector<128x128xf32>
      %c0_11 = arith.constant 0 : index
      %c0_12 = arith.constant 0 : index
      %19 = vector.load %arg9[%c0_11, %c0_12] : memref<8x128xf32, #tpu.memory_space<vmem>>, vector<8x128xf32>
      %20 = vector.shape_cast %18 : vector<128x128xf32> to vector<16x8x128xf32>
      %cst = arith.constant dense<0.000000e+00> : vector<8x128xf32>
      %21 = vector.multi_reduction <add>, %20, %cst [0] : vector<16x8x128xf32> to vector<8x128xf32>
      %22 = arith.addf %19, %21 : vector<8x128xf32>
      %c0_13 = arith.constant 0 : index
      %c0_14 = arith.constant 0 : index
      %23 = vector.load %arg9[%c0_13, %c0_14] : memref<8x128xf32, #tpu.memory_space<vmem>>, vector<8x128xf32>
      tpu.vector_store %arg9[%c0_13, %c0_14], %22 {strides = array<i32>} : memref<8x128xf32, #tpu.memory_space<vmem>>, vector<8x128xf32>,
    } else {
    }
    %c0_i32_6 = arith.constant 0 : i32
    %12 = arith.cmpi eq, %arg0, %c0_i32_6 : i32
    %13 = arith.extui %12 : i1 to i32
    %c0_i32_7 = arith.constant 0 : i32
    %14 = arith.cmpi ne, %13, %c0_i32_7 : i32
    scf.if %14 {
      %c0 = arith.constant 0 : index
      %c0_8 = arith.constant 0 : index
      %15 = vector.load %arg9[%c0, %c0_8] : memref<8x128xf32, #tpu.memory_space<vmem>>, vector<8x128xf32>
      %16 = vector.shape_cast %15 : vector<8x128xf32> to vector<1x8x128xf32>
      %cst = arith.constant dense<0.000000e+00> : vector<1xf32>
      %17 = vector.multi_reduction <add>, %16, %cst [1, 2] : vector<1x8x128xf32> to vector<1xf32>
      %18 = vector.shape_cast %17 : vector<1xf32> to vector<1x1x1xf32>
      %19 = vector.extract %18[0, 0, 0] : f32 from vector<1x1x1xf32>
      %20 = vector.broadcast %19 : f32 to vector<1x1xf32>
      %cst_9 = arith.constant 6.10351563E-5 : f32
      %21 = vector.broadcast %cst_9 : f32 to vector<1x1xf32>
      %22 = arith.mulf %20, %21 : vector<1x1xf32>
      %c0_10 = arith.constant 0 : index
      %c0_11 = arith.constant 0 : index
      %23 = vector.load %arg8[%c0_10, %c0_11] : memref<1x1xf32, #tpu.memory_space<vmem>>, vector<1x1xf32>
      tpu.vector_store %arg8[%c0_10, %c0_11], %22 {strides = array<i32>} : memref<1x1xf32, #tpu.memory_space<vmem>>, vector<1x1xf32>,
    } else {
    }
    return
  }
  func.func @transform_0(%arg0: i32) -> (i32, i32) {
    %c0_i32 = arith.constant 0 : i32
    %c0_i32_0 = arith.constant 0 : i32
    %c0_i32_1 = arith.constant 0 : i32
    return %c0_i32, %c0_i32_0 : i32, i32
  }
  func.func @transform_1(%arg0: i32) -> (i32, i32, i32) {
    %c0_i32 = arith.constant 0 : i32
    %c0_i32_0 = arith.constant 0 : i32
    %c0_i32_1 = arith.constant 0 : i32
    return %c0_i32, %c0_i32_0, %arg0 : i32, i32, i32
  }
  func.func @transform_2(%arg0: i32) -> (i32, i32) {
    %c0_i32 = arith.constant 0 : i32
    %c0_i32_0 = arith.constant 0 : i32
    return %arg0, %c0_i32 : i32, i32
  }
  func.func @transform_3(%arg0: i32) -> (i32, i32) {
    %c0_i32 = arith.constant 0 : i32
    %c0_i32_0 = arith.constant 0 : i32
    return %arg0, %c0_i32 : i32, i32
  }
  func.func @transform_4(%arg0: i32) -> (i32, i32) {
    %c0_i32 = arith.constant 0 : i32
    %c0_i32_0 = arith.constant 0 : i32
    %c0_i32_1 = arith.constant 0 : i32
    return %c0_i32, %c0_i32_0 : i32, i32
  }
  func.func @transform_5(%arg0: i32) -> (i32, i32) {
    %c0_i32 = arith.constant 0 : i32
    %c0_i32_0 = arith.constant 0 : i32
    %c0_i32_1 = arith.constant 0 : i32
    return %c0_i32, %c0_i32_0 : i32, i32
  }
  func.func @transform_6(%arg0: i32) -> (i32, i32) {
    %c0_i32 = arith.constant 0 : i32
    %c0_i32_0 = arith.constant 0 : i32
    %c0_i32_1 = arith.constant 0 : i32
    return %c0_i32, %c0_i32_0 : i32, i32
  }
  func.func @transform_7(%arg0: i32) -> (i32, i32) {
    %c0_i32 = arith.constant 0 : i32
    %c0_i32_0 = arith.constant 0 : i32
    %c0_i32_1 = arith.constant 0 : i32
    return %c0_i32, %c0_i32_0 : i32, i32
  }
}

</mosaic_0001>

<llo_original>
// kernel: tpu_custom_call.1
$region0: #{tpu_custom_call.1}
  #allocation0 [shape = 'u32[]', space=smem, size = 0x4, offset = 0x4, fixed_abs, tag = 'smem constant byte address 0x4 - core index']
  #allocation1 [shape = 'u32[144,128]{1,0:T(1,128)}', space=vmem, size = 0x12000, scoped, tag = 'internal scratch']
  #allocation2 [shape = 'f32[8,128]{1,0:T(8,128)}', space=vmem, size = 0x1000, scoped, tag = 'scratch operand']
  %s0 = inlined_call_operand.hbm [shape: f32[8,14], index: 0, kind: input, shape index: {}]
  %s1 = inlined_call_operand.hbm [shape: f32[3,8,256], index: 1, kind: input, shape index: {}]
  %s2 = inlined_call_operand.hbm [shape: f32[128,128], index: 2, kind: input, shape index: {}]
  %s3 = inlined_call_operand.hbm [shape: f32[128,128], index: 3, kind: input, shape index: {}]
  %s4 = inlined_call_operand.hbm [shape: f32[1,1], index: 4, kind: output, shape index: {0}]
  %s5 = inlined_call_operand.vmem [shape: f32[8,2], index: 5, kind: output, shape index: {1}]
  %s6 = inlined_call_operand.hbm [shape: f32[1,1], index: 6, kind: output, shape index: {2}]
  %s7 = inlined_call_operand.hbm [shape: f32[1,1], index: 7, kind: output, shape index: {3}]
  %8 = xla_tuple %s4, %s5, %s6, %s7
  %s9 = sld [smem:[#allocation0]]
  $region94: #{tpu_custom_call.1} parent=0
    _
  %s11 = ssub.s32 1, %s9
  %s12 = scalar_select 0, %s11, %s9
  $region1: #{tpu_custom_call.1} parent=0
    #allocation3 [shape = 'u8[4096]{0}', space=vmem, size = 0x1000, scoped, tag = 'input window, operand 0, single buffered']
    #allocation4 [shape = 's32[1]{0}', space=sflag, size = 0x4, scoped, tag = 'scoped memory for tpu_custom_call.1']
    #allocation5 [shape = 's32[1]{0}', space=sflag, size = 0x4, scoped, tag = 'scoped memory for tpu_custom_call.1']
    #allocation6 [shape = 'u8[24576]{0}', space=vmem, size = 0x6000, scoped, tag = 'input window, operand 1, single buffered']
    #allocation7 [shape = 's32[1]{0}', space=sflag, size = 0x4, scoped, tag = 'scoped memory for tpu_custom_call.1']
    #allocation8 [shape = 'u8[65536]{0}', space=vmem, size = 0x10000, scoped, tag = 'input window, operand 2, single buffered']
    #allocation9 [shape = 'u8[65536]{0}', space=vmem, size = 0x10000, scoped, tag = 'input window, operand 3, single buffered']
    #allocation10 [shape = 's32[1]{0}', space=sflag, size = 0x4, scoped, tag = 'scoped memory for tpu_custom_call.1']
    #allocation11 [shape = 'u8[512]{0}', space=vmem, size = 0x400, scoped, tag = 'output window, operand 0, single buffered']
    #allocation12 [shape = 'u8[512]{0}', space=vmem, size = 0x400, scoped, tag = 'output window, operand 2, single buffered']
    #allocation13 [shape = 's32[1]{0}', space=sflag, size = 0x4, scoped, tag = 'scoped memory for tpu_custom_call.1']
    #allocation14 [shape = 'u8[512]{0}', space=vmem, size = 0x400, scoped, tag = 'output window, operand 3, single buffered']
    %13 = vsyncpa [#allocation4], 0
    %14 = vsyncpa [#allocation7], 0
    %15 = vsyncpa [#allocation10], 0
    %16 = vsyncpa [#allocation5], 0
    %17 = vsyncpa [#allocation13], 0
    // Predicated region
    $region2: #{tpu_custom_call.1} parent=1 // pred_check
      _
    $region3: #{tpu_custom_call.1} parent=1 // pred_check_branch
      %19 = sbr.rel (0) target = $region5
    $region4: #{tpu_custom_call.1} parent=1 // pred_region
      %s21 = ssub.s32 128, 128
      %22 = vsyncadd [#allocation4], %s21
      %s24 = sshll.u32 [#allocation3], 4
      %s25 = int_to_ptr.vmem [resolvable:$true] %s24
      %27 = dma.hbm_to_vmem [thread:$0]  %s0, 128, %s25, [#allocation4]
    $region5: #{tpu_custom_call.1} parent=1 // pred_fallthru
      _
    // Predicated region
    $region6: #{tpu_custom_call.1} parent=1 // pred_check
      _
    $region7: #{tpu_custom_call.1} parent=1 // pred_check_branch
      %29 = sbr.rel (0) target = $region9
    $region8: #{tpu_custom_call.1} parent=1 // pred_region
      %s31 = ssub.s32 768, 768
      %32 = vsyncadd [#allocation7], %s31
      %s33 = sshll.u32 [#allocation6], 4
      %s34 = int_to_ptr.vmem [resolvable:$true] %s33
      %39 = dma.hbm_to_vmem [thread:$0]  %s1, 768, %s34, [#allocation7], 256, 256, 16
    $region9: #{tpu_custom_call.1} parent=1 // pred_fallthru
      _
    // Predicated region
    $region10: #{tpu_custom_call.1} parent=1 // pred_check
      _
    $region11: #{tpu_custom_call.1} parent=1 // pred_check_branch
      %41 = sbr.rel (0) target = $region13
    $region12: #{tpu_custom_call.1} parent=1 // pred_region
      %s43 = ssub.s32 2048, 2048
      %44 = vsyncadd [#allocation7], %s43
      %s45 = sshll.u32 [#allocation8], 4
      %s46 = int_to_ptr.vmem [resolvable:$true] %s45
      %51 = dma.hbm_to_vmem [thread:$0]  %s2, 2048, %s46, [#allocation7], 128, 128, 8
    $region13: #{tpu_custom_call.1} parent=1 // pred_fallthru
      _
    // Predicated region
    $region14: #{tpu_custom_call.1} parent=1 // pred_check
      _
    $region15: #{tpu_custom_call.1} parent=1 // pred_check_branch
      %53 = sbr.rel (0) target = $region17
    $region16: #{tpu_custom_call.1} parent=1 // pred_region
      %s55 = ssub.s32 2048, 2048
      %56 = vsyncadd [#allocation10], %s55
      %s57 = sshll.u32 [#allocation9], 4
      %s58 = int_to_ptr.vmem [resolvable:$true] %s57
      %63 = dma.hbm_to_vmem [thread:$0]  %s3, 2048, %s58, [#allocation10], 128, 128, 8
    $region17: #{tpu_custom_call.1} parent=1 // pred_fallthru
      _
    // Predicated region
    $region18: #{tpu_custom_call.1} parent=1 // pred_check
      _
    $region19: #{tpu_custom_call.1} parent=1 // pred_check_branch
      %65 = sbr.rel (0) target = $region21
    $region20: #{tpu_custom_call.1} parent=1 // pred_region
      %66 = dma.done [#allocation4], 128
    $region21: #{tpu_custom_call.1} parent=1 // pred_fallthru
      _
    // Predicated region
    $region22: #{tpu_custom_call.1} parent=1 // pred_check
      _
    $region23: #{tpu_custom_call.1} parent=1 // pred_check_branch
      %68 = sbr.rel (0) target = $region25
    $region24: #{tpu_custom_call.1} parent=1 // pred_region
      %69 = dma.done [#allocation7], 768
    $region25: #{tpu_custom_call.1} parent=1 // pred_fallthru
      _
    // Predicated region
    $region26: #{tpu_custom_call.1} parent=1 // pred_check
      _
    $region27: #{tpu_custom_call.1} parent=1 // pred_check_branch
      %71 = sbr.rel (0) target = $region29
    $region28: #{tpu_custom_call.1} parent=1 // pred_region
      %72 = dma.done [#allocation7], 2048
    $region29: #{tpu_custom_call.1} parent=1 // pred_fallthru
      _
    // Predicated region
    $region30: #{tpu_custom_call.1} parent=1 // pred_check
      _
    $region31: #{tpu_custom_call.1} parent=1 // pred_check_branch
      %74 = sbr.rel (0) target = $region33
    $region32: #{tpu_custom_call.1} parent=1 // pred_region
      %75 = dma.done [#allocation10], 2048
    $region33: #{tpu_custom_call.1} parent=1 // pred_fallthru
      _
    %p76 = scmp.eq.s32.totalorder 0, 0
    // Predicated region
    $region34: #{tpu_custom_call.1} parent=1 // pred_check
      %p77 = pneg %p76
    $region35: #{tpu_custom_call.1} parent=1 // pred_check_branch
      %79 = sbr.rel (%p77) target = $region37
    $region36: #{tpu_custom_call.1} parent=1 // pred_region
      %v80 = vld [vmem:[#allocation3] sm:$0xff]
      %82 = vrot.lane.b32.xlu0 %v80, 125
      %v83 = vpop.permute.xlu0 %82
      %v85 = vsub.f32 %v80, %v83
      %v86 = vand.u32 2147483647, %v85
      %vm87 = vcmp.lt.f32.partialorder %v86, 1.0
      %v88 = vmul.f32 %v86, 0.5
      %v89 = vmul.f32 %v88, %v86
      %v90 = vsub.f32 %v86, 0.5
      %v91 = vsel %vm87, %v89, %v90
      %vm92 = vcmask 23552
      %v93 = vsel %vm92, %v91, 0.0
      %94 = vadd.xlane.f32.xlu0 %v93
      %v95 = vpop.xlane.xlu0 %94
      %v96 = vrot.slane %v95, 4
      %v97 = vadd.f32 %v95, %v96
      %v98 = vrot.slane %v97, 2
      %v99 = vadd.f32 %v97, %v98
      %v100 = vrot.slane %v99, 1
      %v101 = vadd.f32 %v99, %v100
      %s102 = vtos %v101
      %v103 = vstv %s102
      %v104 = vmul.f32 %v103, 0.125
      %vm105 = vcmask 0
      %106 = vst.msk [vmem:[#allocation11] sm:$0x1] %vm105, %v104
      %v107 = vsub.f32 0.0, %v80
      %108 = vrot.lane.b32.xlu0 %v80, 4
      %v109 = vpop.permute.xlu0 %108
      %v111 = vmul.f32 %v80, %v109
      %v112 = vmul.f32 %v107, %v109
      %114 = vrot.lane.b32.xlu0 %v112, 127
      %v115 = vpop.permute.xlu0 %114
      %v117 = vsub.f32 %v111, %v115
      %118 = vrot.lane.b32.xlu0 %v112, 126
      %v119 = vpop.permute.xlu0 %118
      %v121 = vsub.f32 %v117, %v119
      %122 = vrot.lane.b32.xlu0 %v112, 125
      %v123 = vpop.permute.xlu0 %122
      %v125 = vsub.f32 %v121, %v123
      %126 = vrot.lane.b32.xlu0 %v80, 3
      %v127 = vpop.permute.xlu0 %126
      %v129 = vmul.f32 %v80, %v127
      %130 = vrot.lane.b32.xlu0 %v80, 5
      %v131 = vpop.permute.xlu0 %130
      %v133 = vmul.f32 %v107, %v131
      %135 = vrot.lane.b32.xlu0 %v133, 127
      %v136 = vpop.permute.xlu0 %135
      %v138 = vadd.f32 %v129, %v136
      %v139 = vmul.f32 %v107, %v127
      %141 = vrot.lane.b32.xlu0 %v139, 126
      %v142 = vpop.permute.xlu0 %141
      %v144 = vsub.f32 %v138, %v142
      %145 = vrot.lane.b32.xlu0 %v133, 125
      %v146 = vpop.permute.xlu0 %145
      %v148 = vadd.f32 %v144, %v146
      %149 = vrot.lane.b32.xlu0 %v80, 2
      %v150 = vpop.permute.xlu0 %149
      %v152 = vmul.f32 %v80, %v150
      %v153 = vmul.f32 %v107, %v150
      %155 = vrot.lane.b32.xlu0 %v153, 127
      %v156 = vpop.permute.xlu0 %155
      %v158 = vadd.f32 %v152, %v156
      %159 = vrot.lane.b32.xlu0 %v80, 6
      %v160 = vpop.permute.xlu0 %159
      %v162 = vmul.f32 %v107, %v160
      %164 = vrot.lane.b32.xlu0 %v162, 126
      %v165 = vpop.permute.xlu0 %164
      %v167 = vadd.f32 %v158, %v165
      %168 = vrot.lane.b32.xlu0 %v162, 125
      %v169 = vpop.permute.xlu0 %168
      %v171 = vsub.f32 %v167, %v169
      %172 = vrot.lane.b32.xlu0 %v80, 1
      %v173 = vpop.permute.xlu0 %172
      %v175 = vmul.f32 %v80, %v173
      %176 = vrot.lane.b32.xlu0 %v139, 127
      %v177 = vpop.permute.xlu0 %176
      %v179 = vsub.f32 %v175, %v177
      %180 = vrot.lane.b32.xlu0 %v133, 126
      %v181 = vpop.permute.xlu0 %180
      %v183 = vadd.f32 %v179, %v181
      %184 = vrot.lane.b32.xlu0 %v80, 7
      %v185 = vpop.permute.xlu0 %184
      %v187 = vmul.f32 %v107, %v185
      %189 = vrot.lane.b32.xlu0 %v187, 125
      %v190 = vpop.permute.xlu0 %189
      %v192 = vadd.f32 %v183, %v190
      %v193 = vmul.f32 %v148, %v148
      %v194 = vmul.f32 %v171, %v171
      %v195 = vadd.f32 %v193, %v194
      %v196 = vmul.f32 %v192, %v192
      %v197 = vadd.f32 %v195, %v196
      %v198 = vrsqrt.pop %v197
      %v199 = vmul.f32 %v197, %v198
      %vm200 = vcmp.eq.f32.partialorder %v197, inf
      %v201 = vsel %vm200, %v197, %v199
      %vm202 = vcmp.eq.f32.partialorder %v197, 0.0
      %v203 = vand.u32 %v197, 2147483648
      %v204 = vsel %vm202, %v203, %v201
      %206 = vrot.lane.b32.xlu0 %v204, 118
      %v207 = vpop.permute.xlu0 %206
      %vm209 = vcmask 7168
      %210 = vst.msk [vmem:[%s5] sm:$0xff] %vm209, %v207
      %v211 = vand.u32 2147483647, %v125
      %213 = vrot.lane.b32.xlu0 %v211, 119
      %v214 = vpop.permute.xlu0 %213
      %vm216 = vcmask 15368
      %217 = vst.msk [vmem:[%s5] sm:$0xff] %vm216, %v214
    $region37: #{tpu_custom_call.1} parent=1 // pred_fallthru
      _
    %p218 = scmp.lt.s32.totalorder 0, 1
    // Predicated region
    $region38: #{tpu_custom_call.1} parent=1 // pred_check
      %p219 = pneg %p218
    $region39: #{tpu_custom_call.1} parent=1 // pred_check_branch
      %221 = sbr.rel (%p219) target = $region41
    $region40: #{tpu_custom_call.1} parent=1 // pred_region
      %v222 = vld [vmem:[#allocation3] sm:$0xff]
      %v223 = vmul.f32 %v222, %v222
      %225 = vrot.lane.b32.xlu0 %v223, 122
      %v226 = vpop.permute.xlu0 %225
      %vm228 = vcmask 31744
      %v229 = vsel %vm228, %v226, 0.0
      %230 = vadd.xlane.f32.xlu0 %v229
      %v231 = vpop.xlane.xlu0 %230
      %v232 = vrsqrt.pop %v231
      %v233 = vmul.f32 %v222, %v232
      %v234 = vmul.f32 %v233, %v233
      %236 = vrot.lane.b32.xlu0 %v234, 127
      %v237 = vpop.permute.xlu0 %236
      %v239 = vadd.f32 %v234, %v237
      %v240 = vmul.f32 %v239, 2.0
      %v241 = vsub.f32 1.0, %v240
      %243 = vrot.lane.b32.xlu0 %v233, 127
      %v244 = vpop.permute.xlu0 %243
      %v246 = vmul.f32 %v233, %v244
      %247 = vrot.lane.b32.xlu0 %v233, 3
      %v248 = vpop.permute.xlu0 %247
      %v250 = vmul.f32 %v233, %v248
      %252 = vrot.lane.b32.xlu0 %v250, 126
      %v253 = vpop.permute.xlu0 %252
      %v255 = vsub.f32 %v246, %v253
      %v256 = vmul.f32 %v255, 2.0
      %257 = vrot.lane.b32.xlu0 %v233, 126
      %v258 = vpop.permute.xlu0 %257
      %v260 = vmul.f32 %v233, %v258
      %261 = vrot.lane.b32.xlu0 %v233, 2
      %v262 = vpop.permute.xlu0 %261
      %v264 = vmul.f32 %v233, %v262
      %266 = vrot.lane.b32.xlu0 %v264, 127
      %v267 = vpop.permute.xlu0 %266
      %v269 = vadd.f32 %v260, %v267
      %v270 = vmul.f32 %v269, 2.0
      %v271 = vadd.f32 %v246, %v253
      %v272 = vmul.f32 %v271, 2.0
      %273 = vrot.lane.b32.xlu0 %v234, 126
      %v274 = vpop.permute.xlu0 %273
      %v276 = vadd.f32 %v234, %v274
      %v277 = vmul.f32 %v276, 2.0
      %v278 = vsub.f32 1.0, %v277
      %279 = vrot.lane.b32.xlu0 %v233, 1
      %v280 = vpop.permute.xlu0 %279
      %v282 = vmul.f32 %v233, %v280
      %284 = vrot.lane.b32.xlu0 %v282, 1
      %v285 = vpop.permute.xlu0 %284
      %v287 = vsub.f32 %v246, %v285
      %v288 = vmul.f32 %v287, 2.0
      %v289 = vsub.f32 %v260, %v267
      %v290 = vmul.f32 %v289, 2.0
      %v291 = vadd.f32 %v246, %v285
      %v292 = vmul.f32 %v291, 2.0
      %293 = vrot.lane.b32.xlu0 %v223, 118
      %v294 = vpop.permute.xlu0 %293
      %v296 = vsel %vm228, %v294, 0.0
      %297 = vadd.xlane.f32.xlu0 %v296
      %v298 = vpop.xlane.xlu0 %297
      %v299 = vrsqrt.pop %v298
      %v300 = vmul.f32 %v222, %v299
      %v301 = vmul.f32 %v300, %v300
      %303 = vrot.lane.b32.xlu0 %v301, 127
      %v304 = vpop.permute.xlu0 %303
      %v306 = vadd.f32 %v301, %v304
      %v307 = vmul.f32 %v306, 2.0
      %v308 = vsub.f32 1.0, %v307
      %310 = vrot.lane.b32.xlu0 %v300, 127
      %v311 = vpop.permute.xlu0 %310
      %v313 = vmul.f32 %v300, %v311
      %314 = vrot.lane.b32.xlu0 %v300, 3
      %v315 = vpop.permute.xlu0 %314
      %v317 = vmul.f32 %v300, %v315
      %319 = vrot.lane.b32.xlu0 %v317, 126
      %v320 = vpop.permute.xlu0 %319
      %v322 = vsub.f32 %v313, %v320
      %v323 = vmul.f32 %v322, 2.0
      %324 = vrot.lane.b32.xlu0 %v300, 126
      %v325 = vpop.permute.xlu0 %324
      %v327 = vmul.f32 %v300, %v325
      %328 = vrot.lane.b32.xlu0 %v300, 2
      %v329 = vpop.permute.xlu0 %328
      %v331 = vmul.f32 %v300, %v329
      %333 = vrot.lane.b32.xlu0 %v331, 127
      %v334 = vpop.permute.xlu0 %333
      %v336 = vadd.f32 %v327, %v334
      %v337 = vmul.f32 %v336, 2.0
      %v338 = vadd.f32 %v313, %v320
      %v339 = vmul.f32 %v338, 2.0
      %340 = vrot.lane.b32.xlu0 %v301, 126
      %v341 = vpop.permute.xlu0 %340
      %v343 = vadd.f32 %v301, %v341
      %v344 = vmul.f32 %v343, 2.0
      %v345 = vsub.f32 1.0, %v344
      %346 = vrot.lane.b32.xlu0 %v300, 1
      %v347 = vpop.permute.xlu0 %346
      %v349 = vmul.f32 %v300, %v347
      %351 = vrot.lane.b32.xlu0 %v349, 1
      %v352 = vpop.permute.xlu0 %351
      %v354 = vsub.f32 %v313, %v352
      %v355 = vmul.f32 %v354, 2.0
      %v356 = vsub.f32 %v327, %v334
      %v357 = vmul.f32 %v356, 2.0
      %v358 = vadd.f32 %v313, %v352
      %v359 = vmul.f32 %v358, 2.0
      %361 = vrot.lane.b32.xlu0 %v222, 3
      %v362 = vpop.permute.xlu0 %361
      %v364 = vsub.f32 %v222, %v362
      %366 = vrot.lane.b32.xlu0 %v308, 124
      %v367 = vpop.permute.xlu0 %366
      %v369 = vmul.f32 %v241, %v367
      %371 = vrot.lane.b32.xlu0 %v339, 124
      %v372 = vpop.permute.xlu0 %371
      %v374 = vmul.f32 %v272, %v372
      %376 = vrot.lane.b32.xlu0 %v374, 1
      %v377 = vpop.permute.xlu0 %376
      %v379 = vadd.f32 %v369, %v377
      %381 = vrot.lane.b32.xlu0 %v357, 124
      %v382 = vpop.permute.xlu0 %381
      %v384 = vmul.f32 %v290, %v382
      %386 = vrot.lane.b32.xlu0 %v384, 1
      %v387 = vpop.permute.xlu0 %386
      %v389 = vadd.f32 %v379, %v387
      %391 = vrot.lane.b32.xlu0 %v323, 125
      %v392 = vpop.permute.xlu0 %391
      %v394 = vmul.f32 %v241, %v392
      %396 = vrot.lane.b32.xlu0 %v345, 124
      %v397 = vpop.permute.xlu0 %396
      %v399 = vmul.f32 %v272, %v397
      %401 = vrot.lane.b32.xlu0 %v399, 1
      %v402 = vpop.permute.xlu0 %401
      %v404 = vadd.f32 %v394, %v402
      %406 = vrot.lane.b32.xlu0 %v359, 123
      %v407 = vpop.permute.xlu0 %406
      %v409 = vmul.f32 %v290, %v407
      %411 = vrot.lane.b32.xlu0 %v409, 1
      %v412 = vpop.permute.xlu0 %411
      %v414 = vadd.f32 %v404, %v412
      %416 = vrot.lane.b32.xlu0 %v337, 125
      %v417 = vpop.permute.xlu0 %416
      %v419 = vmul.f32 %v241, %v417
      %421 = vrot.lane.b32.xlu0 %v355, 123
      %v422 = vpop.permute.xlu0 %421
      %v424 = vmul.f32 %v272, %v422
      %426 = vrot.lane.b32.xlu0 %v424, 1
      %v427 = vpop.permute.xlu0 %426
      %v429 = vadd.f32 %v419, %v427
      %v430 = vmul.f32 %v290, %v367
      %432 = vrot.lane.b32.xlu0 %v430, 1
      %v433 = vpop.permute.xlu0 %432
      %v435 = vadd.f32 %v429, %v433
      %436 = vrot.lane.b32.xlu0 %v308, 123
      %v437 = vpop.permute.xlu0 %436
      %v439 = vmul.f32 %v256, %v437
      %v440 = vmul.f32 %v278, %v372
      %v441 = vadd.f32 %v439, %v440
      %442 = vrot.lane.b32.xlu0 %v357, 125
      %v443 = vpop.permute.xlu0 %442
      %v445 = vmul.f32 %v292, %v443
      %447 = vrot.lane.b32.xlu0 %v445, 127
      %v448 = vpop.permute.xlu0 %447
      %v450 = vadd.f32 %v441, %v448
      %451 = vrot.lane.b32.xlu0 %v323, 124
      %v452 = vpop.permute.xlu0 %451
      %v454 = vmul.f32 %v256, %v452
      %v455 = vmul.f32 %v278, %v397
      %v456 = vadd.f32 %v454, %v455
      %457 = vrot.lane.b32.xlu0 %v359, 124
      %v458 = vpop.permute.xlu0 %457
      %v460 = vmul.f32 %v292, %v458
      %462 = vrot.lane.b32.xlu0 %v460, 127
      %v463 = vpop.permute.xlu0 %462
      %v465 = vadd.f32 %v456, %v463
      %466 = vrot.lane.b32.xlu0 %v337, 124
      %v467 = vpop.permute.xlu0 %466
      %v469 = vmul.f32 %v256, %v467
      %v470 = vmul.f32 %v278, %v422
      %v471 = vadd.f32 %v469, %v470
      %472 = vrot.lane.b32.xlu0 %v308, 125
      %v473 = vpop.permute.xlu0 %472
      %v475 = vmul.f32 %v292, %v473
      %477 = vrot.lane.b32.xlu0 %v475, 127
      %v478 = vpop.permute.xlu0 %477
      %v480 = vadd.f32 %v471, %v478
      %v481 = vmul.f32 %v270, %v437
      %482 = vrot.lane.b32.xlu0 %v339, 125
      %v483 = vpop.permute.xlu0 %482
      %v485 = vmul.f32 %v288, %v483
      %487 = vrot.lane.b32.xlu0 %v485, 127
      %v488 = vpop.permute.xlu0 %487
      %v490 = vadd.f32 %v481, %v488
      %v491 = vmul.f32 %v241, %v382
      %v492 = vadd.f32 %v490, %v491
      %v493 = vmul.f32 %v270, %v452
      %494 = vrot.lane.b32.xlu0 %v345, 125
      %v495 = vpop.permute.xlu0 %494
      %v497 = vmul.f32 %v288, %v495
      %499 = vrot.lane.b32.xlu0 %v497, 127
      %v500 = vpop.permute.xlu0 %499
      %v502 = vadd.f32 %v493, %v500
      %v503 = vmul.f32 %v241, %v407
      %v504 = vadd.f32 %v502, %v503
      %v505 = vmul.f32 %v270, %v467
      %506 = vrot.lane.b32.xlu0 %v355, 124
      %v507 = vpop.permute.xlu0 %506
      %v509 = vmul.f32 %v288, %v507
      %511 = vrot.lane.b32.xlu0 %v509, 127
      %v512 = vpop.permute.xlu0 %511
      %v514 = vadd.f32 %v505, %v512
      %v515 = vadd.f32 %v514, %v369
      %517 = vrot.lane.b32.xlu0 %v364, 5
      %v518 = vpop.permute.xlu0 %517
      %v520 = vmul.f32 %v241, %v518
      %521 = vrot.lane.b32.xlu0 %v364, 3
      %v522 = vpop.permute.xlu0 %521
      %v524 = vmul.f32 %v272, %v522
      %526 = vrot.lane.b32.xlu0 %v524, 1
      %v527 = vpop.permute.xlu0 %526
      %v529 = vadd.f32 %v520, %v527
      %530 = vrot.lane.b32.xlu0 %v364, 2
      %v531 = vpop.permute.xlu0 %530
      %v533 = vmul.f32 %v290, %v531
      %535 = vrot.lane.b32.xlu0 %v533, 1
      %v536 = vpop.permute.xlu0 %535
      %v538 = vadd.f32 %v529, %v536
      %539 = vrot.lane.b32.xlu0 %v364, 4
      %v540 = vpop.permute.xlu0 %539
      %v542 = vmul.f32 %v256, %v540
      %v543 = vmul.f32 %v278, %v522
      %v544 = vadd.f32 %v542, %v543
      %v545 = vmul.f32 %v292, %v522
      %547 = vrot.lane.b32.xlu0 %v545, 127
      %v548 = vpop.permute.xlu0 %547
      %v550 = vadd.f32 %v544, %v548
      %v551 = vmul.f32 %v270, %v540
      %v552 = vmul.f32 %v288, %v540
      %554 = vrot.lane.b32.xlu0 %v552, 127
      %v555 = vpop.permute.xlu0 %554
      %v557 = vadd.f32 %v551, %v555
      %v558 = vmul.f32 %v241, %v531
      %v559 = vadd.f32 %v557, %v558
      %v560 = vld [vmem:[#allocation6] sm:$0xff]
      %v561 = vld [vmem:[#allocation6 + $0x8] sm:$0xff]
      %s562 = scalar_lea.vmem [#allocation6], 16
      %v563 = vld [vmem:[%s562] sm:$0xff]
      %v564 = vld [vmem:[%s562 + $0x8] sm:$0xff]
      %s565 = scalar_lea.vmem [#allocation6], 32
      %v566 = vld [vmem:[%s565] sm:$0xff]
      %v567 = vld [vmem:[%s565 + $0x8] sm:$0xff]
      %v568 = vsub.f32 %v389, 1.0
      %570 = vset.pattern.permute.xlu0 8
      %571 = vperm.xlu0 %570, %v568
      %v572 = vpop.permute.xlu0 %571
      %v574 = vmul.f32 %v572, %v560
      %v575 = vmul.f32 %v572, %v561
      %577 = vset.pattern.permute.xlu0 8
      %578 = vperm.xlu0 %577, %v414
      %v579 = vpop.permute.xlu0 %578
      %v581 = vmul.f32 %v579, %v563
      %v582 = vmul.f32 %v579, %v564
      %v583 = vadd.f32 %v574, %v581
      %v584 = vadd.f32 %v575, %v582
      %586 = vset.pattern.permute.xlu0 8
      %587 = vperm.xlu0 %586, %v435
      %v588 = vpop.permute.xlu0 %587
      %v590 = vmul.f32 %v588, %v566
      %v591 = vmul.f32 %v588, %v567
      %v592 = vadd.f32 %v583, %v590
      %v593 = vadd.f32 %v584, %v591
      %595 = vset.pattern.permute.xlu0 8
      %596 = vperm.xlu0 %595, %v538
      %v597 = vpop.permute.xlu0 %596
      %v599 = vadd.f32 %v592, %v597
      %v600 = vadd.f32 %v593, %v597
      %602 = vset.pattern.permute.xlu0 7
      %603 = vperm.xlu0 %602, %v450
      %v604 = vpop.permute.xlu0 %603
      %v606 = vmul.f32 %v604, %v560
      %v607 = vmul.f32 %v604, %v561
      %v608 = vsub.f32 %v465, 1.0
      %610 = vset.pattern.permute.xlu0 7
      %611 = vperm.xlu0 %610, %v608
      %v612 = vpop.permute.xlu0 %611
      %v614 = vmul.f32 %v612, %v563
      %v615 = vmul.f32 %v612, %v564
      %v616 = vadd.f32 %v606, %v614
      %v617 = vadd.f32 %v607, %v615
      %619 = vset.pattern.permute.xlu0 7
      %620 = vperm.xlu0 %619, %v480
      %v621 = vpop.permute.xlu0 %620
      %v623 = vmul.f32 %v621, %v566
      %v624 = vmul.f32 %v621, %v567
      %v625 = vadd.f32 %v616, %v623
      %v626 = vadd.f32 %v617, %v624
      %628 = vset.pattern.permute.xlu0 7
      %629 = vperm.xlu0 %628, %v550
      %v630 = vpop.permute.xlu0 %629
      %v632 = vadd.f32 %v625, %v630
      %v633 = vadd.f32 %v626, %v630
      %635 = vset.pattern.permute.xlu0 7
      %636 = vperm.xlu0 %635, %v492
      %v637 = vpop.permute.xlu0 %636
      %v639 = vmul.f32 %v637, %v560
      %v640 = vmul.f32 %v637, %v561
      %642 = vset.pattern.permute.xlu0 7
      %643 = vperm.xlu0 %642, %v504
      %v644 = vpop.permute.xlu0 %643
      %v646 = vmul.f32 %v644, %v563
      %v647 = vmul.f32 %v644, %v564
      %v648 = vadd.f32 %v639, %v646
      %v649 = vadd.f32 %v640, %v647
      %v650 = vsub.f32 %v515, 1.0
      %652 = vset.pattern.permute.xlu0 7
      %653 = vperm.xlu0 %652, %v650
      %v654 = vpop.permute.xlu0 %653
      %v656 = vmul.f32 %v654, %v566
      %v657 = vmul.f32 %v654, %v567
      %v658 = vadd.f32 %v648, %v656
      %v659 = vadd.f32 %v649, %v657
      %661 = vset.pattern.permute.xlu0 7
      %662 = vperm.xlu0 %661, %v559
      %v663 = vpop.permute.xlu0 %662
      %v665 = vadd.f32 %v658, %v663
      %v666 = vadd.f32 %v659, %v663
      %v667 = vmul.f32 %v599, %v599
      %v668 = vmul.f32 %v600, %v600
      %v669 = vmul.f32 %v632, %v632
      %v670 = vmul.f32 %v633, %v633
      %v671 = vadd.f32 %v667, %v669
      %v672 = vadd.f32 %v668, %v670
      %v673 = vmul.f32 %v665, %v665
      %v674 = vmul.f32 %v666, %v666
      %v675 = vadd.f32 %v671, %v673
      %v676 = vadd.f32 %v672, %v674
      %v677 = vrsqrt.pop %v675
      %v678 = vmul.f32 %v675, %v677
      %vm679 = vcmp.eq.f32.partialorder %v675, inf
      %v680 = vsel %vm679, %v675, %v678
      %vm681 = vcmp.eq.f32.partialorder %v675, 0.0
      %v682 = vand.u32 %v675, 2147483648
      %v683 = vsel %vm681, %v682, %v680
      %v684 = vrsqrt.pop %v676
      %v685 = vmul.f32 %v676, %v684
      %vm686 = vcmp.eq.f32.partialorder %v676, inf
      %v687 = vsel %vm686, %v676, %v685
      %vm688 = vcmp.eq.f32.partialorder %v676, 0.0
      %v689 = vand.u32 %v676, 2147483648
      %v690 = vsel %vm688, %v689, %v687
      %v691 = vadd.f32 %v683, %v690
      %692 = vadd.xlane.f32.xlu0 %v691
      %v693 = vpop.xlane.xlu0 %692
      %v694 = vrot.slane %v693, 4
      %v695 = vadd.f32 %v693, %v694
      %v696 = vrot.slane %v695, 2
      %v697 = vadd.f32 %v695, %v696
      %v698 = vrot.slane %v697, 1
      %v699 = vadd.f32 %v697, %v698
      %s700 = vtos %v699
      %v701 = vstv %s700
      %v702 = vmul.f32 %v701, 0.00390625
      // Predicated region
      $region42: #{tpu_custom_call.1} parent=40 // pred_check
        %p703 = pneg %p76
      $region43: #{tpu_custom_call.1} parent=40 // pred_check_branch
        %705 = sbr.rel (%p703) target = $region45
      $region44: #{tpu_custom_call.1} parent=40 // pred_region
        %vm706 = vcmask 0
        %707 = vst.msk [vmem:[#allocation12] sm:$0x1] %vm706, %v702
      $region45: #{tpu_custom_call.1} parent=40 // pred_fallthru
        _
      %p708 = scmp.ne.s32.totalorder 0, 0
      // Predicated region
      $region46: #{tpu_custom_call.1} parent=40 // pred_check
        %p709 = pneg %p708
      $region47: #{tpu_custom_call.1} parent=40 // pred_check_branch
        %711 = sbr.rel (%p709) target = $region49
      $region48: #{tpu_custom_call.1} parent=40 // pred_region
        %v712 = vld [vmem:[#allocation12] sm:$0x1]
        %v713 = vadd.f32 %v712, %v702
        %vm714 = vcmask 0
        %715 = vst.msk [vmem:[#allocation12] sm:$0x1] %vm714, %v713
      $region49: #{tpu_custom_call.1} parent=40 // pred_fallthru
        _
    $region41: #{tpu_custom_call.1} parent=1 // pred_fallthru
      _
    // Predicated region
    $region50: #{tpu_custom_call.1} parent=1 // pred_check
      %p716 = pneg %p76
    $region51: #{tpu_custom_call.1} parent=1 // pred_check_branch
      %718 = sbr.rel (%p716) target = $region53
    $region52: #{tpu_custom_call.1} parent=1 // pred_region
      %719 = vst [vmem:[#allocation2] sm:$0xff] 0.0
    $region53: #{tpu_custom_call.1} parent=1 // pred_fallthru
      _
    // Predicated region
    $region54: #{tpu_custom_call.1} parent=1 // pred_check
      %p720 = pneg %p218
    $region55: #{tpu_custom_call.1} parent=1 // pred_check_branch
      %722 = sbr.rel (%p720) target = $region57
    $region56: #{tpu_custom_call.1} parent=1 // pred_region
      %v723 = vld [vmem:[#allocation8] sm:$0xff]
      %v724 = vld [vmem:[#allocation8 + $0x8] sm:$0xff]
      %v725 = vld [vmem:[#allocation8 + $0x10] sm:$0xff]
      %v726 = vld [vmem:[#allocation8 + $0x18] sm:$0xff]
      %v727 = vld [vmem:[#allocation8 + $0x20] sm:$0xff]
      %v728 = vld [vmem:[#allocation8 + $0x28] sm:$0xff]
      %v729 = vld [vmem:[#allocation8 + $0x30] sm:$0xff]
      %v730 = vld [vmem:[#allocation8 + $0x38] sm:$0xff]
      %v731 = vld [vmem:[#allocation8 + $0x40] sm:$0xff]
      %v732 = vld [vmem:[#allocation8 + $0x48] sm:$0xff]
      %v733 = vld [vmem:[#allocation8 + $0x50] sm:$0xff]
      %v734 = vld [vmem:[#allocation8 + $0x58] sm:$0xff]
      %v735 = vld [vmem:[#allocation8 + $0x60] sm:$0xff]
      %v736 = vld [vmem:[#allocation8 + $0x68] sm:$0xff]
      %v737 = vld [vmem:[#allocation8 + $0x70] sm:$0xff]
      %v738 = vld [vmem:[#allocation8 + $0x78] sm:$0xff]
      %v739 = vld [vmem:[#allocation9] sm:$0xff]
      %v740 = vld [vmem:[#allocation9 + $0x8] sm:$0xff]
      %v741 = vld [vmem:[#allocation9 + $0x10] sm:$0xff]
      %v742 = vld [vmem:[#allocation9 + $0x18] sm:$0xff]
      %v743 = vld [vmem:[#allocation9 + $0x20] sm:$0xff]
      %v744 = vld [vmem:[#allocation9 + $0x28] sm:$0xff]
      %v745 = vld [vmem:[#allocation9 + $0x30] sm:$0xff]
      %v746 = vld [vmem:[#allocation9 + $0x38] sm:$0xff]
      %v747 = vld [vmem:[#allocation9 + $0x40] sm:$0xff]
      %v748 = vld [vmem:[#allocation9 + $0x48] sm:$0xff]
      %v749 = vld [vmem:[#allocation9 + $0x50] sm:$0xff]
      %v750 = vld [vmem:[#allocation9 + $0x58] sm:$0xff]
      %v751 = vld [vmem:[#allocation9 + $0x60] sm:$0xff]
      %v752 = vld [vmem:[#allocation9 + $0x68] sm:$0xff]
      %v753 = vld [vmem:[#allocation9 + $0x70] sm:$0xff]
      %v754 = vld [vmem:[#allocation9 + $0x78] sm:$0xff]
      %v755 = vsub.f32 %v723, %v739
      %v756 = vsub.f32 %v724, %v740
      %v757 = vsub.f32 %v725, %v741
      %v758 = vsub.f32 %v726, %v742
      %v759 = vsub.f32 %v727, %v743
      %v760 = vsub.f32 %v728, %v744
      %v761 = vsub.f32 %v729, %v745
      %v762 = vsub.f32 %v730, %v746
      %v763 = vsub.f32 %v731, %v747
      %v764 = vsub.f32 %v732, %v748
      %v765 = vsub.f32 %v733, %v749
      %v766 = vsub.f32 %v734, %v750
      %v767 = vsub.f32 %v735, %v751
      %v768 = vsub.f32 %v736, %v752
      %v769 = vsub.f32 %v737, %v753
      %v770 = vsub.f32 %v738, %v754
      %v771 = vmul.f32 %v755, %v755
      %v772 = vmul.f32 %v756, %v756
      %v773 = vmul.f32 %v757, %v757
      %v774 = vmul.f32 %v758, %v758
      %v775 = vmul.f32 %v759, %v759
      %v776 = vmul.f32 %v760, %v760
      %v777 = vmul.f32 %v761, %v761
      %v778 = vmul.f32 %v762, %v762
      %v779 = vmul.f32 %v763, %v763
      %v780 = vmul.f32 %v764, %v764
      %v781 = vmul.f32 %v765, %v765
      %v782 = vmul.f32 %v766, %v766
      %v783 = vmul.f32 %v767, %v767
      %v784 = vmul.f32 %v768, %v768
      %v785 = vmul.f32 %v769, %v769
      %v786 = vmul.f32 %v770, %v770
      %v787 = vld [vmem:[#allocation2] sm:$0xff]
      %v788 = vadd.f32 %v771, %v772
      %v789 = vadd.f32 %v788, %v773
      %v790 = vadd.f32 %v789, %v774
      %v791 = vadd.f32 %v790, %v775
      %v792 = vadd.f32 %v791, %v776
      %v793 = vadd.f32 %v792, %v777
      %v794 = vadd.f32 %v793, %v778
      %v795 = vadd.f32 %v794, %v779
      %v796 = vadd.f32 %v795, %v780
      %v797 = vadd.f32 %v796, %v781
      %v798 = vadd.f32 %v797, %v782
      %v799 = vadd.f32 %v798, %v783
      %v800 = vadd.f32 %v799, %v784
      %v801 = vadd.f32 %v800, %v785
      %v802 = vadd.f32 %v801, %v786
      %v803 = vadd.f32 %v787, %v802
      %804 = vst [vmem:[#allocation2] sm:$0xff] %v803
    $region57: #{tpu_custom_call.1} parent=1 // pred_fallthru
      _
    // Predicated region
    $region58: #{tpu_custom_call.1} parent=1 // pred_check
      %p805 = pneg %p76
    $region59: #{tpu_custom_call.1} parent=1 // pred_check_branch
      %807 = sbr.rel (%p805) target = $region61
    $region60: #{tpu_custom_call.1} parent=1 // pred_region
      %v808 = vld [vmem:[#allocation2] sm:$0xff]
      %809 = vadd.xlane.f32.xlu0 %v808
      %v810 = vpop.xlane.xlu0 %809
      %v811 = vrot.slane %v810, 4
      %v812 = vadd.f32 %v810, %v811
      %v813 = vrot.slane %v812, 2
      %v814 = vadd.f32 %v812, %v813
      %v815 = vrot.slane %v814, 1
      %v816 = vadd.f32 %v814, %v815
      %s817 = vtos %v816
      %v818 = vstv %s817
      %v819 = vmul.f32 %v818, 6.1035156e-05
      %vm820 = vcmask 0
      %821 = vst.msk [vmem:[#allocation14] sm:$0x1] %vm820, %v819
    $region61: #{tpu_custom_call.1} parent=1 // pred_fallthru
      _
    // Predicated region
    $region62: #{tpu_custom_call.1} parent=1 // pred_check
      _
    $region63: #{tpu_custom_call.1} parent=1 // pred_check_branch
      %823 = sbr.rel (0) target = $region65
    $region64: #{tpu_custom_call.1} parent=1 // pred_region
      %s825 = ssub.s32 16, 16
      %826 = vsyncadd [#allocation5], %s825
      %s828 = sshll.u32 [#allocation11], 4
      %s829 = int_to_ptr.vmem [resolvable:$true] %s828
      %831 = dma.vmem_to_hbm [thread:$0]  %s829, 16, %s4, [#allocation5]
    $region65: #{tpu_custom_call.1} parent=1 // pred_fallthru
      _
    // Predicated region
    $region66: #{tpu_custom_call.1} parent=1 // pred_check
      _
    $region67: #{tpu_custom_call.1} parent=1 // pred_check_branch
      %833 = sbr.rel (0) target = $region69
    $region68: #{tpu_custom_call.1} parent=1 // pred_region
      _
    $region69: #{tpu_custom_call.1} parent=1 // pred_fallthru
      _
    // Predicated region
    $region70: #{tpu_custom_call.1} parent=1 // pred_check
      _
    $region71: #{tpu_custom_call.1} parent=1 // pred_check_branch
      %835 = sbr.rel (0) target = $region73
    $region72: #{tpu_custom_call.1} parent=1 // pred_region
      %s837 = ssub.s32 16, 16
      %838 = vsyncadd [#allocation13], %s837
      %s840 = sshll.u32 [#allocation12], 4
      %s841 = int_to_ptr.vmem [resolvable:$true] %s840
      %843 = dma.vmem_to_hbm [thread:$0]  %s841, 16, %s6, [#allocation13]
    $region73: #{tpu_custom_call.1} parent=1 // pred_fallthru
      _
    // Predicated region
    $region74: #{tpu_custom_call.1} parent=1 // pred_check
      _
    $region75: #{tpu_custom_call.1} parent=1 // pred_check_branch
      %845 = sbr.rel (0) target = $region77
    $region76: #{tpu_custom_call.1} parent=1 // pred_region
      %s847 = ssub.s32 16, 16
      %848 = vsyncadd [#allocation13], %s847
      %s850 = sshll.u32 [#allocation14], 4
      %s851 = int_to_ptr.vmem [resolvable:$true] %s850
      %853 = dma.vmem_to_hbm [thread:$0]  %s851, 16, %s7, [#allocation13]
    $region77: #{tpu_custom_call.1} parent=1 // pred_fallthru
      _
    // Predicated region
    $region78: #{tpu_custom_call.1} parent=1 // pred_check
      _
    $region79: #{tpu_custom_call.1} parent=1 // pred_check_branch
      %855 = sbr.rel (0) target = $region81
    $region80: #{tpu_custom_call.1} parent=1 // pred_region
      %856 = dma.done [#allocation5], 16
    $region81: #{tpu_custom_call.1} parent=1 // pred_fallthru
      _
    // Predicated region
    $region82: #{tpu_custom_call.1} parent=1 // pred_check
      _
    $region83: #{tpu_custom_call.1} parent=1 // pred_check_branch
      %858 = sbr.rel (0) target = $region85
    $region84: #{tpu_custom_call.1} parent=1 // pred_region
      _
    $region85: #{tpu_custom_call.1} parent=1 // pred_fallthru
      _
    // Predicated region
    $region86: #{tpu_custom_call.1} parent=1 // pred_check
      _
    $region87: #{tpu_custom_call.1} parent=1 // pred_check_branch
      %860 = sbr.rel (0) target = $region89
    $region88: #{tpu_custom_call.1} parent=1 // pred_region
      %861 = dma.done [#allocation13], 16
    $region89: #{tpu_custom_call.1} parent=1 // pred_fallthru
      _
    // Predicated region
    $region90: #{tpu_custom_call.1} parent=1 // pred_check
      _
    $region91: #{tpu_custom_call.1} parent=1 // pred_check_branch
      %863 = sbr.rel (0) target = $region93
    $region92: #{tpu_custom_call.1} parent=1 // pred_region
      %864 = dma.done [#allocation13], 16
    $region93: #{tpu_custom_call.1} parent=1 // pred_fallthru
      _
    %865 = vsyncpa [#allocation4], 1
    %866 = vsyncpa [#allocation7], 1
    %867 = vsyncpa [#allocation10], 1
    %868 = vsyncpa [#allocation5], 1
    %869 = vsyncpa [#allocation13], 1

</llo_original>
